<compile_context>
chip_gen: v6e
topology: v6e:2x2x1
jax: 0.10.0
libtpu: 0.0.40
codegen_flags: <defaults>
</compile_context>

<pallas_src>
import functools

import jax
import jax.numpy as jnp
from jax import lax
from jax.experimental import pallas as pl
from jax.experimental.pallas import tpu as pltpu


# ---------------------------------------------------------------------------
# Attention kernel: per (batch, q-tile, head-block) step.
# ---------------------------------------------------------------------------
def _attn_kernel(*refs, has_bias, mxu_dtype, exp_dtype, approx_reciprocal):
    if has_bias:
        (q_ref, k_ref, v_ref, bias_ref, wo_ref, bo_ref, out_ref, acc_ref) = refs
    else:
        (q_ref, k_ref, v_ref, wo_ref, bo_ref, out_ref, acc_ref) = refs
        bias_ref = None

    hb = pl.program_id(2)

    @pl.when(hb == 0)
    def _init():
        acc_ref[...] = jnp.zeros_like(acc_ref)

    q = q_ref[...]                      # (hg, tq, d)   mxu_dtype (scale pre-folded)
    k = k_ref[...]                      # (hg, S,  d)   mxu_dtype
    v = v_ref[...]                      # (hg, S,  d)   mxu_dtype
    hg = q.shape[0]

    # Scores: batched matmul over the head sub-axis, contracting d (no explicit
    # K transpose through the XLU).
    s = jnp.einsum("hqd,hkd->hqk", q, k,
                   preferred_element_type=jnp.float32)          # (hg, tq, S)
    if has_bias:
        s = s + bias_ref[...].astype(jnp.float32)

    # Softmax over keys; statistics in f32, exp optionally in bf16 (v6e/v7x),
    # normalization via EUP reciprocal + VPU multiply.
    s = s - jnp.max(s, axis=-1, keepdims=True)
    p = jnp.exp(s.astype(exp_dtype))
    denom = jnp.sum(p.astype(jnp.float32), axis=-1, keepdims=True)
    if approx_reciprocal:
        p = p.astype(jnp.float32) * pl.reciprocal(denom, approx=True)
    else:
        p = p.astype(jnp.float32) / denom

    # P @ V per head.
    o = jnp.einsum("hqk,hkd->hqd", p.astype(mxu_dtype), v,
                   preferred_element_type=jnp.float32)          # (hg, tq, d)

    # Output projection for this head block, accumulated over head blocks.
    wo = wo_ref[...]                                            # (hg, d, H)
    contrib = jnp.dot(o[0].astype(mxu_dtype), wo[0],
                      preferred_element_type=jnp.float32)       # (tq, H)
    for hh in range(1, hg):
        contrib = contrib + jnp.dot(o[hh].astype(mxu_dtype), wo[hh],
                                    preferred_element_type=jnp.float32)
    acc_ref[...] += contrib

    @pl.when(hb == pl.num_programs(2) - 1)
    def _finalize():
        out_ref[...] = (acc_ref[...] + bo_ref[...]).astype(out_ref.dtype)


# ---------------------------------------------------------------------------
# Helpers.
# ---------------------------------------------------------------------------
def _pick_q_tile(S):
    """Largest divisor of S that is a multiple of 8 and <= 512; else S."""
    if S <= 512:
        return S
    for t in range(512, 7, -8):
        if S % t == 0:
            return t
    # TODO(synk): pad S to a multiple of 256 and mask instead of full-S tiles.
    return S


def _pick_heads_per_block(n_heads, d, requested):
    if requested is None:
        # Chip-agnostic default (v5e MXU is 128-wide); pass 256 // d on v6e/v7x.
        hpb = max(1, 128 // d)
    else:
        hpb = requested
    hpb = max(1, min(hpb, n_heads))
    while n_heads % hpb != 0:
        hpb -= 1
    return hpb


def _project_heads(x, w, b, n_heads, d, mxu_dtype, scale=None):
    """Hoisted full-width input projection -> (B, n_heads, S, d) in mxu_dtype."""
    H = w.shape[0]
    if scale is not None:
        w = w * scale
        b = b * scale
    wh = w.reshape(H, n_heads, d).astype(mxu_dtype)
    y = jnp.einsum("bsh,hnd->bnsd", x.astype(mxu_dtype), wh,
                   preferred_element_type=jnp.float32)
    y = y + b.reshape(1, n_heads, 1, d).astype(jnp.float32)
    return y.astype(mxu_dtype)


# ---------------------------------------------------------------------------
# Public wrapper.
# ---------------------------------------------------------------------------
def multi_head_attention(q, k, v, params, attn_bias=None, *, n_heads,
                         q_tile=None, heads_per_block=None,
                         mxu_dtype=jnp.bfloat16, exp_dtype=jnp.float32,
                         approx_reciprocal=True):
    B, S, H = q.shape
    assert H % n_heads == 0
    d = H // n_heads
    scale = float(d) ** (-0.5)

    if q_tile is None:
        q_tile = _pick_q_tile(S)
    assert S % q_tile == 0
    n_q = S // q_tile

    hpb = _pick_heads_per_block(n_heads, d, heads_per_block)
    n_hb = n_heads // hpb

    has_bias = attn_bias is not None
    if has_bias:
        assert attn_bias.shape == (B, n_heads, S, S), attn_bias.shape

    # Hoisted input projections (review item 1): one full-width (H,H) matmul
    # each, directly into head-major (B, nh, S, d) layout. Scale folded into wq.
    qp = _project_heads(q, params["wq"], params["bq"], n_heads, d, mxu_dtype, scale)
    kp = _project_heads(k, params["wk"], params["bk"], n_heads, d, mxu_dtype)
    vp = _project_heads(v, params["wv"], params["bv"], n_heads, d, mxu_dtype)

    wo = params["wo"].reshape(n_heads, d, H).astype(mxu_dtype)   # (nh, d, H)
    bo = params["bo"].reshape(1, H).astype(jnp.float32)

    q_spec = pl.BlockSpec((None, hpb, q_tile, d), lambda b, qi, hb: (b, hb, qi, 0))
    kv_spec = pl.BlockSpec((None, hpb, S, d), lambda b, qi, hb: (b, hb, 0, 0))
    wo_spec = pl.BlockSpec((hpb, d, H), lambda b, qi, hb: (hb, 0, 0))
    bo_spec = pl.BlockSpec((1, H), lambda b, qi, hb: (0, 0))
    out_spec = pl.BlockSpec((None, q_tile, H), lambda b, qi, hb: (b, qi, 0))

    in_specs = [q_spec, kv_spec, kv_spec]
    inputs = [qp, kp, vp]
    if has_bias:
        in_specs.append(
            pl.BlockSpec((None, hpb, q_tile, S), lambda b, qi, hb: (b, hb, qi, 0)))
        inputs.append(attn_bias)
    in_specs += [wo_spec, bo_spec]
    inputs += [wo, bo]

    # VMEM limit derived from actual (double-buffered) block footprint, not a
    # hard-coded constant (review v7x item).
    msz = jnp.dtype(mxu_dtype).itemsize
    block_bytes = (hpb * q_tile * d * msz          # q block
                   + 2 * hpb * S * d * msz         # k + v blocks
                   + hpb * d * H * msz             # wo slab
                   + H * 4                          # bo
                   + q_tile * H * jnp.dtype(q.dtype).itemsize)  # out block
    if has_bias:
        block_bytes += hpb * q_tile * S * jnp.dtype(attn_bias.dtype).itemsize
    vmem_required = 2 * block_bytes + q_tile * H * 4            # + acc scratch
    vmem_limit = int(min(max(int(1.25 * vmem_required) + (4 << 20), 16 << 20),
                         128 << 20))

    kernel = functools.partial(_attn_kernel, has_bias=has_bias,
                               mxu_dtype=mxu_dtype, exp_dtype=exp_dtype,
                               approx_reciprocal=approx_reciprocal)

    return pl.pallas_call(
        kernel,
        out_shape=jax.ShapeDtypeStruct((B, S, H), q.dtype),
        grid=(B, n_q, n_hb),
        in_specs=in_specs,
        out_specs=out_spec,
        scratch_shapes=[pltpu.VMEM((q_tile, H), jnp.float32)],
        compiler_params=pltpu.CompilerParams(
            dimension_semantics=("parallel", "parallel", "arbitrary"),
            vmem_limit_bytes=vmem_limit,
        ),
    )(*inputs)


# ---------------------------------------------------------------------------
# Parameter init (PyTorch-Linear-style uniform bound) and pure-JAX reference.
# ---------------------------------------------------------------------------
def init_params(key, hidden_size):
    bound = 1.0 / (hidden_size ** 0.5)
    keys = jax.random.split(key, 8)

    def u(k, shape):
        return jax.random.uniform(k, shape, jnp.float32, -bound, bound)

    return {
        "wq": u(keys[0], (hidden_size, hidden_size)), "bq": u(keys[1], (1, hidden_size)),
        "wk": u(keys[2], (hidden_size, hidden_size)), "bk": u(keys[3], (1, hidden_size)),
        "wv": u(keys[4], (hidden_size, hidden_size)), "bv": u(keys[5], (1, hidden_size)),
        "wo": u(keys[6], (hidden_size, hidden_size)), "bo": u(keys[7], (1, hidden_size)),
    }


def reference_mha(q, k, v, params, attn_bias, n_heads):
    B, S, H = q.shape
    d = H // n_heads
    scale = d ** (-0.5)
    qp = (q @ params["wq"] + params["bq"]).reshape(B, S, n_heads, d).transpose(0, 2, 1, 3)
    kp = (k @ params["wk"] + params["bk"]).reshape(B, S, n_heads, d).transpose(0, 2, 1, 3)
    vp = (v @ params["wv"] + params["bv"]).reshape(B, S, n_heads, d).transpose(0, 2, 1, 3)
    s = jnp.einsum("bhqd,bhkd->bhqk", qp * scale, kp)
    if attn_bias is not None:
        s = s + attn_bias
    p = jax.nn.softmax(s, axis=-1)
    o = jnp.einsum("bhqk,bhkd->bhqd", p, vp).transpose(0, 2, 1, 3).reshape(B, S, H)
    return o @ params["wo"] + params["bo"]


if __name__ == "__main__":
    B, S, H, n_heads = 2, 8, 32, 4

    key = jax.random.PRNGKey(0)
    kq, kk, kv, kb, kp = jax.random.split(key, 5)
    q = jax.random.normal(kq, (B, S, H), jnp.float32)
    k = jax.random.normal(kk, (B, S, H), jnp.float32)
    v = jax.random.normal(kv, (B, S, H), jnp.float32)
    attn_bias = 0.1 * jax.random.normal(kb, (B, n_heads, S, S), jnp.float32)
    params = init_params(kp, H)

    # 1) Exact-parity configuration: f32 MXU operands, exact reciprocal.
    out = multi_head_attention(q, k, v, params, attn_bias, n_heads=n_heads,
                               mxu_dtype=jnp.float32, approx_reciprocal=False)
    out = jax.block_until_ready(out)
    ref = reference_mha(q, k, v, params, attn_bias, n_heads)
    assert out.shape == (B, S, H)
    assert jnp.allclose(out, ref, atol=5e-3, rtol=5e-3), "mismatch (f32, bias)"

    # 2) Default fast path: bf16 MXU operands, approx reciprocal, bf16 bias.
    bias_bf16 = attn_bias.astype(jnp.bfloat16)
    out_fast = multi_head_attention(q, k, v, params, bias_bf16, n_heads=n_heads)
    out_fast = jax.block_until_ready(out_fast)
    ref_fast = reference_mha(q, k, v, params, bias_bf16.astype(jnp.float32), n_heads)
    assert jnp.allclose(out_fast, ref_fast, atol=5e-2, rtol=5e-2), "mismatch (bf16, bias)"

    # 3) No-bias fast path: bias input omitted entirely (no zero-filled DMA).
    out_nb = multi_head_attention(q, k, v, params, None, n_heads=n_heads)
    out_nb = jax.block_until_ready(out_nb)
    ref_nb = reference_mha(q, k, v, params, None, n_heads)
    assert jnp.allclose(out_nb, ref_nb, atol=5e-2, rtol=5e-2), "mismatch (bf16, no bias)"

    print("KERNEL_OK")
</pallas_src>

<mosaic_0001>
module attributes {stable_mosaic.version = 11 : i64} {
  func.func @_attn_kernel(%arg0: i32, %arg1: i32, %arg2: i32, %arg3: memref<1x4x8x8xf32, #tpu.memory_space<vmem>>, %arg4: memref<1x4x8x8xf32, #tpu.memory_space<vmem>>, %arg5: memref<1x4x8x8xf32, #tpu.memory_space<vmem>>, %arg6: memref<1x4x8x8xf32, #tpu.memory_space<vmem>>, %arg7: memref<4x8x32xf32, #tpu.memory_space<vmem>>, %arg8: memref<1x32xf32, #tpu.memory_space<vmem>>, %arg9: memref<1x8x32xf32, #tpu.memory_space<vmem>>, %arg10: memref<8x32xf32, #tpu.memory_space<vmem>>) attributes {dimension_semantics = [#tpu.dimension_semantics<parallel>, #tpu.dimension_semantics<parallel>, #tpu.dimension_semantics<arbitrary>], iteration_bounds = array<i64: 2, 1, 1>, scalar_prefetch = 0 : i64, scratch_operands = 1 : i64, tpu.core_type = #tpu.core_type<tc>, window_params = [{transform_indices = @transform_0, window_bounds = array<i64: 1, 4, 8, 8>}, {transform_indices = @transform_1, window_bounds = array<i64: 1, 4, 8, 8>}, {transform_indices = @transform_2, window_bounds = array<i64: 1, 4, 8, 8>}, {transform_indices = @transform_3, window_bounds = array<i64: 1, 4, 8, 8>}, {transform_indices = @transform_4, window_bounds = array<i64: 4, 8, 32>}, {pipeline_mode = #tpu.pipeline_mode<synchronous>, transform_indices = @transform_5, window_bounds = array<i64: 1, 32>}, {transform_indices = @transform_6, window_bounds = array<i64: 1, 8, 32>}]} {
    %c0_i32 = arith.constant 0 : i32
    %0 = arith.cmpi eq, %arg2, %c0_i32 : i32
    %1 = arith.extui %0 : i1 to i32
    %c0_i32_0 = arith.constant 0 : i32
    %2 = arith.cmpi ne, %1, %c0_i32_0 : i32
    scf.if %2 {
      %cst_32 = arith.constant 0.000000e+00 : f32
      %53 = vector.broadcast %cst_32 : f32 to vector<8x32xf32>
      %c0_33 = arith.constant 0 : index
      %c0_34 = arith.constant 0 : index
      %54 = vector.load %arg10[%c0_33, %c0_34] : memref<8x32xf32, #tpu.memory_space<vmem>>, vector<8x32xf32>
      tpu.vector_store %arg10[%c0_33, %c0_34], %53 {strides = array<i32>} : memref<8x32xf32, #tpu.memory_space<vmem>>, vector<8x32xf32>,
    } else {
    }
    %c0 = arith.constant 0 : index
    %c0_1 = arith.constant 0 : index
    %c0_2 = arith.constant 0 : index
    %c0_3 = arith.constant 0 : index
    %3 = vector.load %arg3[%c0, %c0_1, %c0_2, %c0_3] : memref<1x4x8x8xf32, #tpu.memory_space<vmem>>, vector<1x4x8x8xf32>
    %4 = vector.shape_cast %3 : vector<1x4x8x8xf32> to vector<4x8x8xf32>
    %c0_4 = arith.constant 0 : index
    %c0_5 = arith.constant 0 : index
    %c0_6 = arith.constant 0 : index
    %c0_7 = arith.constant 0 : index
    %5 = vector.load %arg4[%c0_4, %c0_5, %c0_6, %c0_7] : memref<1x4x8x8xf32, #tpu.memory_space<vmem>>, vector<1x4x8x8xf32>
    %6 = vector.shape_cast %5 : vector<1x4x8x8xf32> to vector<4x8x8xf32>
    %c0_8 = arith.constant 0 : index
    %c0_9 = arith.constant 0 : index
    %c0_10 = arith.constant 0 : index
    %c0_11 = arith.constant 0 : index
    %7 = vector.load %arg5[%c0_8, %c0_9, %c0_10, %c0_11] : memref<1x4x8x8xf32, #tpu.memory_space<vmem>>, vector<1x4x8x8xf32>
    %8 = vector.shape_cast %7 : vector<1x4x8x8xf32> to vector<4x8x8xf32>
    "tpu.trace_start"() <{level = 10 : i32, message = "hqd,hkd->hqk"}> : () -> ()
    %cst = arith.constant dense<0.000000e+00> : vector<4x8x8xf32>
    %9 = tpu.matmul %4, %6, %cst {dimension_numbers = #tpu.dot_dimension_numbers<[2], [2], [1], [1], [0, 0, 0, 1, 1, 1], [0], [0]>} : vector<4x8x8xf32>, vector<4x8x8xf32>, vector<4x8x8xf32> -> vector<4x8x8xf32>
    "tpu.trace_stop"() : () -> ()
    %c0_12 = arith.constant 0 : index
    %c0_13 = arith.constant 0 : index
    %c0_14 = arith.constant 0 : index
    %c0_15 = arith.constant 0 : index
    %10 = vector.load %arg6[%c0_12, %c0_13, %c0_14, %c0_15] : memref<1x4x8x8xf32, #tpu.memory_space<vmem>>, vector<1x4x8x8xf32>
    %11 = vector.shape_cast %10 : vector<1x4x8x8xf32> to vector<4x8x8xf32>
    %12 = arith.addf %9, %11 : vector<4x8x8xf32>
    %cst_16 = arith.constant dense<0xFF800000> : vector<4x8xf32>
    %13 = vector.multi_reduction <maximumf>, %12, %cst_16 [2] : vector<4x8x8xf32> to vector<4x8xf32>
    %14 = vector.shape_cast %13 : vector<4x8xf32> to vector<4x8x1xf32>
    %15 = vector.broadcast %14 : vector<4x8x1xf32> to vector<4x8x8xf32>
    %16 = arith.subf %12, %15 : vector<4x8x8xf32>
    %17 = math.exp %16 : vector<4x8x8xf32>
    %cst_17 = arith.constant dense<0.000000e+00> : vector<4x8xf32>
    %18 = vector.multi_reduction <add>, %17, %cst_17 [2] : vector<4x8x8xf32> to vector<4x8xf32>
    %19 = vector.shape_cast %18 : vector<4x8xf32> to vector<4x8x1xf32>
    %20 = vector.broadcast %19 : vector<4x8x1xf32> to vector<4x8x8xf32>
    %21 = arith.divf %17, %20 : vector<4x8x8xf32>
    "tpu.trace_start"() <{level = 10 : i32, message = "hqk,hkd->hqd"}> : () -> ()
    %cst_18 = arith.constant dense<0.000000e+00> : vector<4x8x8xf32>
    %22 = tpu.matmul %21, %8, %cst_18 {dimension_numbers = #tpu.dot_dimension_numbers<[2], [1], [1], [2], [0, 0, 0, 1, 1, 2], [0], [0]>} : vector<4x8x8xf32>, vector<4x8x8xf32>, vector<4x8x8xf32> -> vector<4x8x8xf32>
    "tpu.trace_stop"() : () -> ()
    %c0_19 = arith.constant 0 : index
    %c0_20 = arith.constant 0 : index
    %c0_21 = arith.constant 0 : index
    %23 = vector.load %arg7[%c0_19, %c0_20, %c0_21] : memref<4x8x32xf32, #tpu.memory_space<vmem>>, vector<4x8x32xf32>
    %24 = vector.extract_strided_slice %22 {offsets = [0, 0, 0], sizes = [1, 8, 8], strides = [1, 1, 1]} : vector<4x8x8xf32> to vector<1x8x8xf32>
    %25 = vector.shape_cast %24 : vector<1x8x8xf32> to vector<8x8xf32>
    %26 = vector.extract_strided_slice %23 {offsets = [0, 0, 0], sizes = [1, 8, 32], strides = [1, 1, 1]} : vector<4x8x32xf32> to vector<1x8x32xf32>
    %27 = vector.shape_cast %26 : vector<1x8x32xf32> to vector<8x32xf32>
    %cst_22 = arith.constant dense<0.000000e+00> : vector<8x32xf32>
    %28 = tpu.matmul %25, %27, %cst_22 {dimension_numbers = #tpu.dot_dimension_numbers<[1], [0], [0], [1], [0, 0, 1, 1], [], []>} : vector<8x8xf32>, vector<8x32xf32>, vector<8x32xf32> -> vector<8x32xf32>
    %29 = vector.extract_strided_slice %22 {offsets = [1, 0, 0], sizes = [1, 8, 8], strides = [1, 1, 1]} : vector<4x8x8xf32> to vector<1x8x8xf32>
    %30 = vector.shape_cast %29 : vector<1x8x8xf32> to vector<8x8xf32>
    %31 = vector.extract_strided_slice %23 {offsets = [1, 0, 0], sizes = [1, 8, 32], strides = [1, 1, 1]} : vector<4x8x32xf32> to vector<1x8x32xf32>
    %32 = vector.shape_cast %31 : vector<1x8x32xf32> to vector<8x32xf32>
    %cst_23 = arith.constant dense<0.000000e+00> : vector<8x32xf32>
    %33 = tpu.matmul %30, %32, %cst_23 {dimension_numbers = #tpu.dot_dimension_numbers<[1], [0], [0], [1], [0, 0, 1, 1], [], []>} : vector<8x8xf32>, vector<8x32xf32>, vector<8x32xf32> -> vector<8x32xf32>
    %34 = arith.addf %28, %33 : vector<8x32xf32>
    %35 = vector.extract_strided_slice %22 {offsets = [2, 0, 0], sizes = [1, 8, 8], strides = [1, 1, 1]} : vector<4x8x8xf32> to vector<1x8x8xf32>
    %36 = vector.shape_cast %35 : vector<1x8x8xf32> to vector<8x8xf32>
    %37 = vector.extract_strided_slice %23 {offsets = [2, 0, 0], sizes = [1, 8, 32], strides = [1, 1, 1]} : vector<4x8x32xf32> to vector<1x8x32xf32>
    %38 = vector.shape_cast %37 : vector<1x8x32xf32> to vector<8x32xf32>
    %cst_24 = arith.constant dense<0.000000e+00> : vector<8x32xf32>
    %39 = tpu.matmul %36, %38, %cst_24 {dimension_numbers = #tpu.dot_dimension_numbers<[1], [0], [0], [1], [0, 0, 1, 1], [], []>} : vector<8x8xf32>, vector<8x32xf32>, vector<8x32xf32> -> vector<8x32xf32>
    %40 = arith.addf %34, %39 : vector<8x32xf32>
    %41 = vector.extract_strided_slice %22 {offsets = [3, 0, 0], sizes = [1, 8, 8], strides = [1, 1, 1]} : vector<4x8x8xf32> to vector<1x8x8xf32>
    %42 = vector.shape_cast %41 : vector<1x8x8xf32> to vector<8x8xf32>
    %43 = vector.extract_strided_slice %23 {offsets = [3, 0, 0], sizes = [1, 8, 32], strides = [1, 1, 1]} : vector<4x8x32xf32> to vector<1x8x32xf32>
    %44 = vector.shape_cast %43 : vector<1x8x32xf32> to vector<8x32xf32>
    %cst_25 = arith.constant dense<0.000000e+00> : vector<8x32xf32>
    %45 = tpu.matmul %42, %44, %cst_25 {dimension_numbers = #tpu.dot_dimension_numbers<[1], [0], [0], [1], [0, 0, 1, 1], [], []>} : vector<8x8xf32>, vector<8x32xf32>, vector<8x32xf32> -> vector<8x32xf32>
    %46 = arith.addf %40, %45 : vector<8x32xf32>
    %c0_26 = arith.constant 0 : index
    %c0_27 = arith.constant 0 : index
    %47 = vector.load %arg10[%c0_26, %c0_27] : memref<8x32xf32, #tpu.memory_space<vmem>>, vector<8x32xf32>
    %48 = arith.addf %47, %46 : vector<8x32xf32>
    %c0_28 = arith.constant 0 : index
    %c0_29 = arith.constant 0 : index
    %49 = vector.load %arg10[%c0_28, %c0_29] : memref<8x32xf32, #tpu.memory_space<vmem>>, vector<8x32xf32>
    tpu.vector_store %arg10[%c0_28, %c0_29], %48 {strides = array<i32>} : memref<8x32xf32, #tpu.memory_space<vmem>>, vector<8x32xf32>,
    %c0_i32_30 = arith.constant 0 : i32
    %50 = arith.cmpi eq, %arg2, %c0_i32_30 : i32
    %51 = arith.extui %50 : i1 to i32
    %c0_i32_31 = arith.constant 0 : i32
    %52 = arith.cmpi ne, %51, %c0_i32_31 : i32
    scf.if %52 {
      %c0_32 = arith.constant 0 : index
      %c0_33 = arith.constant 0 : index
      %53 = vector.load %arg10[%c0_32, %c0_33] : memref<8x32xf32, #tpu.memory_space<vmem>>, vector<8x32xf32>
      %c0_34 = arith.constant 0 : index
      %c0_35 = arith.constant 0 : index
      %54 = vector.load %arg8[%c0_34, %c0_35] : memref<1x32xf32, #tpu.memory_space<vmem>>, vector<1x32xf32>
      %55 = vector.broadcast %54 : vector<1x32xf32> to vector<8x32xf32>
      %56 = arith.addf %53, %55 : vector<8x32xf32>
      %c0_36 = arith.constant 0 : index
      %c0_37 = arith.constant 0 : index
      %c0_38 = arith.constant 0 : index
      %57 = vector.load %arg9[%c0_36, %c0_37, %c0_38] : memref<1x8x32xf32, #tpu.memory_space<vmem>>, vector<1x8x32xf32>
      %58 = vector.shape_cast %57 : vector<1x8x32xf32> to vector<8x32xf32>
      %59 = vector.shape_cast %56 : vector<8x32xf32> to vector<1x8x32xf32>
      tpu.vector_store %arg9[%c0_36, %c0_37, %c0_38], %59 {strides = array<i32>} : memref<1x8x32xf32, #tpu.memory_space<vmem>>, vector<1x8x32xf32>,
    } else {
    }
    return
  }
  func.func @transform_0(%arg0: i32, %arg1: i32, %arg2: i32) -> (i32, i32, i32, i32) {
    %c0_i32 = arith.constant 0 : i32
    %c0_i32_0 = arith.constant 0 : i32
    return %arg0, %arg2, %arg1, %c0_i32 : i32, i32, i32, i32
  }
  func.func @transform_1(%arg0: i32, %arg1: i32, %arg2: i32) -> (i32, i32, i32, i32) {
    %c0_i32 = arith.constant 0 : i32
    %c0_i32_0 = arith.constant 0 : i32
    %c0_i32_1 = arith.constant 0 : i32
    return %arg0, %arg2, %c0_i32, %c0_i32_0 : i32, i32, i32, i32
  }
  func.func @transform_2(%arg0: i32, %arg1: i32, %arg2: i32) -> (i32, i32, i32, i32) {
    %c0_i32 = arith.constant 0 : i32
    %c0_i32_0 = arith.constant 0 : i32
    %c0_i32_1 = arith.constant 0 : i32
    return %arg0, %arg2, %c0_i32, %c0_i32_0 : i32, i32, i32, i32
  }
  func.func @transform_3(%arg0: i32, %arg1: i32, %arg2: i32) -> (i32, i32, i32, i32) {
    %c0_i32 = arith.constant 0 : i32
    %c0_i32_0 = arith.constant 0 : i32
    return %arg0, %arg2, %arg1, %c0_i32 : i32, i32, i32, i32
  }
  func.func @transform_4(%arg0: i32, %arg1: i32, %arg2: i32) -> (i32, i32, i32) {
    %c0_i32 = arith.constant 0 : i32
    %c0_i32_0 = arith.constant 0 : i32
    %c0_i32_1 = arith.constant 0 : i32
    return %arg2, %c0_i32, %c0_i32_0 : i32, i32, i32
  }
  func.func @transform_5(%arg0: i32, %arg1: i32, %arg2: i32) -> (i32, i32) {
    %c0_i32 = arith.constant 0 : i32
    %c0_i32_0 = arith.constant 0 : i32
    %c0_i32_1 = arith.constant 0 : i32
    return %c0_i32, %c0_i32_0 : i32, i32
  }
  func.func @transform_6(%arg0: i32, %arg1: i32, %arg2: i32) -> (i32, i32, i32) {
    %c0_i32 = arith.constant 0 : i32
    %c0_i32_0 = arith.constant 0 : i32
    return %arg0, %arg1, %c0_i32 : i32, i32, i32
  }
}

</mosaic_0001>

<llo_original>
// kernel: tpu_custom_call.1
$region0: #{tpu_custom_call.1}
  #allocation0 [shape = 'u32[]', space=smem, size = 0x4, offset = 0x4, fixed_abs, tag = 'smem constant byte address 0x4 - core index']
  #allocation1 [shape = 'u32[144,128]{1,0:T(1,128)}', space=vmem, size = 0x12000, scoped, tag = 'internal scratch']
  #allocation2 [shape = 'f32[8,32]{1,0:T(8,128)}', space=vmem, size = 0x1000, scoped, tag = 'scratch operand']
  %s0 = inlined_call_operand.hbm [shape: f32[2,4,8,8], index: 0, kind: input, shape index: {}]
  %s1 = inlined_call_operand.hbm [shape: f32[2,4,8,8], index: 1, kind: input, shape index: {}]
  %s2 = inlined_call_operand.hbm [shape: f32[2,4,8,8], index: 2, kind: input, shape index: {}]
  %s3 = inlined_call_operand.hbm [shape: f32[2,4,8,8], index: 3, kind: input, shape index: {}]
  %s4 = inlined_call_operand.hbm [shape: f32[4,8,32], index: 4, kind: input, shape index: {}]
  %s5 = inlined_call_operand.vmem [shape: f32[1,32], index: 5, kind: input, shape index: {}]
  %s6 = inlined_call_operand.hbm [shape: f32[2,8,32], index: 6, kind: output, shape index: {}]
  %s7 = sld [smem:[#allocation0]]
  $region85: #{tpu_custom_call.1} parent=0
    _
  %s9 = ssub.s32 1, %s7
  %s10 = scalar_select 0, %s9, %s7
  $region1: #{tpu_custom_call.1} parent=0
    #allocation3 [shape = 'u8[32768]{0}', space=vmem, size = 0x8000, scoped, tag = 'input window, operand 0']
    #allocation4 [shape = 's32[2]{0}', space=sflag, size = 0x8, scoped, tag = 'scoped memory for tpu_custom_call.1']
    #allocation5 [shape = 's32[2]{0}', space=sflag, size = 0x8, scoped, tag = 'scoped memory for tpu_custom_call.1']
    #allocation6 [shape = 'u8[32768]{0}', space=vmem, size = 0x8000, scoped, tag = 'input window, operand 1']
    #allocation7 [shape = 's32[2]{0}', space=sflag, size = 0x8, scoped, tag = 'scoped memory for tpu_custom_call.1']
    #allocation8 [shape = 'u8[32768]{0}', space=vmem, size = 0x8000, scoped, tag = 'input window, operand 2']
    #allocation9 [shape = 'u8[32768]{0}', space=vmem, size = 0x8000, scoped, tag = 'input window, operand 3']
    #allocation10 [shape = 's32[2]{0}', space=sflag, size = 0x8, scoped, tag = 'scoped memory for tpu_custom_call.1']
    #allocation11 [shape = 'u8[16384]{0}', space=vmem, size = 0x4000, scoped, tag = 'input window, operand 4, single buffered']
    #allocation12 [shape = 'u8[8192]{0}', space=vmem, size = 0x2000, scoped, tag = 'output window, operand 0']
    %11 = vsyncpa [#allocation4], 0
    %s12 = scalar_lea.sflag [#allocation4], 1
    %13 = vsyncpa %s12, 0
    %14 = vsyncpa [#allocation7], 0
    %s15 = scalar_lea.sflag [#allocation7], 1
    %16 = vsyncpa %s15, 0
    %17 = vsyncpa [#allocation10], 0
    %s18 = scalar_lea.sflag [#allocation10], 1
    %19 = vsyncpa %s18, 0
    %20 = vsyncpa [#allocation5], 0
    %s21 = scalar_lea.sflag [#allocation5], 1
    %22 = vsyncpa %s21, 0
    loop: start=0, step=1, limit=4
    $region2: #{tpu_custom_call.1} parent=1 // loop_pre_header
      _
    $region3: #{tpu_custom_call.1} parent=1 // loop_header
      %s24 = sphi 0, %s28
      %p25 = scmp.ge.s32.totalorder %s24, 4
      %s31 = sphi 0, %s50
      %s32 = sphi 0, %s46
      %s33 = sphi 0, %s42
      %s34 = sphi 0, %s31
      %s35 = sphi 0, %s32
      %s36 = sphi 0, %s33
      %s37 = sphi 0, %s34
      %s38 = sphi 0, %s35
      %s39 = sphi 0, %s36
      %s57 = sphi 0, %s59
      %s60 = sphi 0, %s57
      %s61 = sphi 0, %s60
      %s77 = sphi 0, %s61
      %s85 = sphi 0, %s87
      %s88 = sphi 0, %s85
      %s89 = sphi 0, %s88
      %s105 = sphi 0, %s89
      %s113 = sphi 0, %s115
      %s116 = sphi 0, %s113
      %s117 = sphi 0, %s116
      %s133 = sphi 0, %s117
      %s143 = sphi 0, %s145
      %s146 = sphi 0, %s143
      %s147 = sphi 0, %s146
      %s163 = sphi 0, %s147
      %s169 = sphi 0, %s171
      %s172 = sphi 0, %s169
      %s173 = sphi 0, %s172
      %s189 = sphi 0, %s173
      %s193 = sphi 0, %s193
      %s195 = sphi 0, %s193
      %s196 = sphi 0, %s195
      %s210 = sphi 0, %s196
      %s218 = sphi 0, %s220
      %s221 = sphi 0, %s218
      %s222 = sphi 0, %s221
      %s238 = sphi 0, %s222
    $region4: #{tpu_custom_call.1} parent=1 // loop_header_branch
      %27 = sbr.rel (%p25) target = $region8
    $region5: #{tpu_custom_call.1} parent=1 // loop_body
      %s29 = ssub.s32 %s24, 1
      %s30 = ssub.s32 %s24, 2
      %s40 = sadd.s32 1, %s33
      %p41 = scmp.ge.s32.totalorder %s40, 1
      %s42 = scalar_select %p41, 0, %s40
      %s43 = sadd.s32 1, %s32
      %s44 = scalar_select %p41, %s43, %s32
      %p45 = scmp.ge.s32.totalorder %s44, 1
      %s46 = scalar_select %p45, 0, %s44
      %s47 = sadd.s32 1, %s31
      %s48 = scalar_select %p45, %s47, %s31
      %p49 = scmp.ge.s32.totalorder %s48, 2
      %s50 = scalar_select %p49, 0, %s48
      %s51 = ssub.s32 %s31, %s50
      %s52 = ssub.s32 %s33, %s42
      %s53 = sor.u32 %s51, %s52
      %s54 = ssub.s32 %s32, %s46
      %s55 = sor.u32 %s53, %s54
      %p56 = scmp.eq.s32.totalorder %s55, 0
      %s58 = sadd.s32 %s57, 1
      %s59 = scalar_select %p56, %s57, %s58
      %p62 = pneg %p56
      %p63 = scmp.eq.s32.totalorder %s24, 1
      %p64 = por %p62, %p63
      %p65 = scmp.ne.s32.totalorder %s57, %s60
      %p66 = scmp.eq.s32.totalorder %s24, 0
      %p67 = por %p65, %p66
      %p68 = scmp.ne.s32.totalorder %s57, %s60
      %p69 = scmp.eq.s32.totalorder %s29, 1
      %p70 = por %p68, %p69
      %p71 = scmp.ne.s32.totalorder %s60, %s61
      %p72 = scmp.eq.s32.totalorder %s29, 0
      %p73 = por %p71, %p72
      %p74 = scmp.ne.s32.totalorder %s60, %s61
      %p75 = scmp.eq.s32.totalorder %s30, 1
      %p76 = por %p74, %p75
      %p78 = scmp.ne.s32.totalorder %s61, %s77
      %p79 = scmp.eq.s32.totalorder %s30, 0
      %p80 = por %p78, %p79
      %s81 = ssub.s32 %s31, %s50
      %s82 = ssub.s32 %s33, %s42
      %s83 = sor.u32 %s81, %s82
      %p84 = scmp.eq.s32.totalorder %s83, 0
      %s86 = sadd.s32 %s85, 1
      %s87 = scalar_select %p84, %s85, %s86
      %p90 = pneg %p84
      %p91 = scmp.eq.s32.totalorder %s24, 1
      %p92 = por %p90, %p91
      %p93 = scmp.ne.s32.totalorder %s85, %s88
      %p94 = scmp.eq.s32.totalorder %s24, 0
      %p95 = por %p93, %p94
      %p96 = scmp.ne.s32.totalorder %s85, %s88
      %p97 = scmp.eq.s32.totalorder %s29, 1
      %p98 = por %p96, %p97
      %p99 = scmp.ne.s32.totalorder %s88, %s89
      %p100 = scmp.eq.s32.totalorder %s29, 0
      %p101 = por %p99, %p100
      %p102 = scmp.ne.s32.totalorder %s88, %s89
      %p103 = scmp.eq.s32.totalorder %s30, 1
      %p104 = por %p102, %p103
      %p106 = scmp.ne.s32.totalorder %s89, %s105
      %p107 = scmp.eq.s32.totalorder %s30, 0
      %p108 = por %p106, %p107
      %s109 = ssub.s32 %s31, %s50
      %s110 = ssub.s32 %s33, %s42
      %s111 = sor.u32 %s109, %s110
      %p112 = scmp.eq.s32.totalorder %s111, 0
      %s114 = sadd.s32 %s113, 1
      %s115 = scalar_select %p112, %s113, %s114
      %p118 = pneg %p112
      %p119 = scmp.eq.s32.totalorder %s24, 1
      %p120 = por %p118, %p119
      %p121 = scmp.ne.s32.totalorder %s113, %s116
      %p122 = scmp.eq.s32.totalorder %s24, 0
      %p123 = por %p121, %p122
      %p124 = scmp.ne.s32.totalorder %s113, %s116
      %p125 = scmp.eq.s32.totalorder %s29, 1
      %p126 = por %p124, %p125
      %p127 = scmp.ne.s32.totalorder %s116, %s117
      %p128 = scmp.eq.s32.totalorder %s29, 0
      %p129 = por %p127, %p128
      %p130 = scmp.ne.s32.totalorder %s116, %s117
      %p131 = scmp.eq.s32.totalorder %s30, 1
      %p132 = por %p130, %p131
      %p134 = scmp.ne.s32.totalorder %s117, %s133
      %p135 = scmp.eq.s32.totalorder %s30, 0
      %p136 = por %p134, %p135
      %s137 = ssub.s32 %s31, %s50
      %s138 = ssub.s32 %s33, %s42
      %s139 = sor.u32 %s137, %s138
      %s140 = ssub.s32 %s32, %s46
      %s141 = sor.u32 %s139, %s140
      %p142 = scmp.eq.s32.totalorder %s141, 0
      %s144 = sadd.s32 %s143, 1
      %s145 = scalar_select %p142, %s143, %s144
      %p148 = pneg %p142
      %p149 = scmp.eq.s32.totalorder %s24, 1
      %p150 = por %p148, %p149
      %p151 = scmp.ne.s32.totalorder %s143, %s146
      %p152 = scmp.eq.s32.totalorder %s24, 0
      %p153 = por %p151, %p152
      %p154 = scmp.ne.s32.totalorder %s143, %s146
      %p155 = scmp.eq.s32.totalorder %s29, 1
      %p156 = por %p154, %p155
      %p157 = scmp.ne.s32.totalorder %s146, %s147
      %p158 = scmp.eq.s32.totalorder %s29, 0
      %p159 = por %p157, %p158
      %p160 = scmp.ne.s32.totalorder %s146, %s147
      %p161 = scmp.eq.s32.totalorder %s30, 1
      %p162 = por %p160, %p161
      %p164 = scmp.ne.s32.totalorder %s147, %s163
      %p165 = scmp.eq.s32.totalorder %s30, 0
      %p166 = por %p164, %p165
      %s167 = ssub.s32 %s33, %s42
      %p168 = scmp.eq.s32.totalorder %s167, 0
      %s170 = sadd.s32 %s169, 1
      %s171 = scalar_select %p168, %s169, %s170
      %p174 = pneg %p168
      %p175 = scmp.eq.s32.totalorder %s24, 1
      %p176 = por %p174, %p175
      %p177 = scmp.ne.s32.totalorder %s169, %s172
      %p178 = scmp.eq.s32.totalorder %s24, 0
      %p179 = por %p177, %p178
      %p180 = scmp.ne.s32.totalorder %s169, %s172
      %p181 = scmp.eq.s32.totalorder %s29, 1
      %p182 = por %p180, %p181
      %p183 = scmp.ne.s32.totalorder %s172, %s173
      %p184 = scmp.eq.s32.totalorder %s29, 0
      %p185 = por %p183, %p184
      %p186 = scmp.ne.s32.totalorder %s172, %s173
      %p187 = scmp.eq.s32.totalorder %s30, 1
      %p188 = por %p186, %p187
      %p190 = scmp.ne.s32.totalorder %s173, %s189
      %p191 = scmp.eq.s32.totalorder %s30, 0
      %p192 = por %p190, %p191
      %s194 = sadd.s32 %s193, 1
      %p197 = scmp.eq.s32.totalorder %s24, 1
      %p198 = scmp.ne.s32.totalorder %s193, %s195
      %p199 = scmp.eq.s32.totalorder %s24, 0
      %p200 = por %p198, %p199
      %p201 = scmp.ne.s32.totalorder %s193, %s195
      %p202 = scmp.eq.s32.totalorder %s29, 1
      %p203 = por %p201, %p202
      %p204 = scmp.ne.s32.totalorder %s195, %s196
      %p205 = scmp.eq.s32.totalorder %s29, 0
      %p206 = por %p204, %p205
      %p207 = scmp.ne.s32.totalorder %s195, %s196
      %p208 = scmp.eq.s32.totalorder %s30, 1
      %p209 = por %p207, %p208
      %p211 = scmp.ne.s32.totalorder %s196, %s210
      %p212 = scmp.eq.s32.totalorder %s30, 0
      %p213 = por %p211, %p212
      %s214 = ssub.s32 %s31, %s50
      %s215 = ssub.s32 %s32, %s46
      %s216 = sor.u32 %s214, %s215
      %p217 = scmp.eq.s32.totalorder %s216, 0
      %s219 = sadd.s32 %s218, 1
      %s220 = scalar_select %p217, %s218, %s219
      %p223 = pneg %p217
      %p224 = scmp.eq.s32.totalorder %s24, 1
      %p225 = por %p223, %p224
      %p226 = scmp.ne.s32.totalorder %s218, %s221
      %p227 = scmp.eq.s32.totalorder %s24, 0
      %p228 = por %p226, %p227
      %p229 = scmp.ne.s32.totalorder %s218, %s221
      %p230 = scmp.eq.s32.totalorder %s29, 1
      %p231 = por %p229, %p230
      %p232 = scmp.ne.s32.totalorder %s221, %s222
      %p233 = scmp.eq.s32.totalorder %s29, 0
      %p234 = por %p232, %p233
      %p235 = scmp.ne.s32.totalorder %s221, %s222
      %p236 = scmp.eq.s32.totalorder %s30, 1
      %p237 = por %p235, %p236
      %p239 = scmp.ne.s32.totalorder %s222, %s238
      %p240 = scmp.eq.s32.totalorder %s30, 0
      %p241 = por %p239, %p240
      %p242 = scmp.le.s32.totalorder 1, %s24
      %p243 = scmp.lt.s32.totalorder %s24, 3
      %p244 = pnand %p242, %p243
      %p245 = pneg %p244
      // Predicated region
      $region9: #{tpu_custom_call.1} parent=5 // pred_check
        _
      $region10: #{tpu_custom_call.1} parent=5 // pred_check_branch
        %247 = sbr.rel (%p244) target = $region12
      $region11: #{tpu_custom_call.1} parent=5 // pred_region
        %s248 = ssub.s32 %s24, 1
        // Predicated region
        $region13: #{tpu_custom_call.1} parent=11 // pred_check
          %p249 = pneg %p185
        $region14: #{tpu_custom_call.1} parent=11 // pred_check_branch
          %251 = sbr.rel (%p249) target = $region16
        $region15: #{tpu_custom_call.1} parent=11 // pred_region
          %s252 = smul.u32 4, %s36
          %s254 = ssub.s32 512, 512
          %255 = vsyncadd [#allocation10], %s254
          %s256 = smul.addr %s252, 128
          %s257 = scalar_lea.hbm %s4, %s256
          %s258 = sshll.u32 [#allocation11], 4
          %s259 = int_to_ptr.vmem [resolvable:$true] %s258
          %264 = dma.hbm_to_vmem [thread:$0]  %s257, 512, %s259, [#allocation10], 128, 128, 8
        $region16: #{tpu_custom_call.1} parent=11 // pred_fallthru
          _
        // Predicated region
        $region17: #{tpu_custom_call.1} parent=11 // pred_check
          %p265 = pneg %p206
        $region18: #{tpu_custom_call.1} parent=11 // pred_check_branch
          %267 = sbr.rel (%p265) target = $region20
        $region19: #{tpu_custom_call.1} parent=11 // pred_region
          _
        $region20: #{tpu_custom_call.1} parent=11 // pred_fallthru
          _
      $region12: #{tpu_custom_call.1} parent=5 // pred_fallthru
        _
      %p268 = scmp.lt.s32.totalorder %s24, 2
      // Predicated region
      $region21: #{tpu_custom_call.1} parent=5 // pred_check
        %p269 = pneg %p268
      $region22: #{tpu_custom_call.1} parent=5 // pred_check_branch
        %271 = sbr.rel (%p269) target = $region24
      $region23: #{tpu_custom_call.1} parent=5 // pred_region
        // Predicated region
        $region25: #{tpu_custom_call.1} parent=23 // pred_check
          %p272 = pneg %p67
        $region26: #{tpu_custom_call.1} parent=23 // pred_check_branch
          %274 = sbr.rel (%p272) target = $region28
        $region27: #{tpu_custom_call.1} parent=23 // pred_region
          %s275 = sand.u32 %s57, 1
          %s276 = scalar_lea.sflag [#allocation4], %s275
          %s277 = sand.u32 %s57, 1
          %s278 = smul.addr %s277, 32
          %s279 = scalar_lea.vmem [#allocation3], %s278
          %s280 = smul.u32 4, %s33
          %s282 = ssub.s32 512, 512
          %283 = vsyncadd %s276, %s282
          %s284 = sadd.s32 %s32, %s280
          %s285 = smul.addr %s31, 4
          %s286 = sadd.s32 %s284, %s285
          %s287 = smul.addr %s286, 128
          %s288 = scalar_lea.hbm %s0, %s287
          %s289 = sshll.u32 %s279, 4
          %s290 = int_to_ptr.vmem [resolvable:$true] %s289
          %295 = dma.hbm_to_vmem [thread:$0]  %s288, 512, %s290, %s276, 128, 128, 8
        $region28: #{tpu_custom_call.1} parent=23 // pred_fallthru
          _
        // Predicated region
        $region29: #{tpu_custom_call.1} parent=23 // pred_check
          %p296 = pneg %p95
        $region30: #{tpu_custom_call.1} parent=23 // pred_check_branch
          %298 = sbr.rel (%p296) target = $region32
        $region31: #{tpu_custom_call.1} parent=23 // pred_region
          %s299 = sand.u32 %s24, 1
          %s300 = scalar_lea.sflag [#allocation7], %s299
          %s301 = sand.u32 %s85, 1
          %s302 = smul.addr %s301, 32
          %s303 = scalar_lea.vmem [#allocation6], %s302
          %s304 = smul.u32 4, %s33
          %s306 = ssub.s32 512, 512
          %307 = vsyncadd %s300, %s306
          %s308 = smul.addr %s31, 4
          %s309 = sadd.s32 %s304, %s308
          %s310 = smul.addr %s309, 128
          %s311 = scalar_lea.hbm %s1, %s310
          %s312 = sshll.u32 %s303, 4
          %s313 = int_to_ptr.vmem [resolvable:$true] %s312
          %318 = dma.hbm_to_vmem [thread:$0]  %s311, 512, %s313, %s300, 128, 128, 8
        $region32: #{tpu_custom_call.1} parent=23 // pred_fallthru
          _
        // Predicated region
        $region33: #{tpu_custom_call.1} parent=23 // pred_check
          %p319 = pneg %p123
        $region34: #{tpu_custom_call.1} parent=23 // pred_check_branch
          %321 = sbr.rel (%p319) target = $region36
        $region35: #{tpu_custom_call.1} parent=23 // pred_region
          %s322 = sand.u32 %s24, 1
          %s323 = scalar_lea.sflag [#allocation7], %s322
          %s324 = sand.u32 %s113, 1
          %s325 = smul.addr %s324, 32
          %s326 = scalar_lea.vmem [#allocation8], %s325
          %s327 = smul.u32 4, %s33
          %s329 = ssub.s32 512, 512
          %330 = vsyncadd %s323, %s329
          %s331 = smul.addr %s31, 4
          %s332 = sadd.s32 %s327, %s331
          %s333 = smul.addr %s332, 128
          %s334 = scalar_lea.hbm %s2, %s333
          %s335 = sshll.u32 %s326, 4
          %s336 = int_to_ptr.vmem [resolvable:$true] %s335
          %341 = dma.hbm_to_vmem [thread:$0]  %s334, 512, %s336, %s323, 128, 128, 8
        $region36: #{tpu_custom_call.1} parent=23 // pred_fallthru
          _
        // Predicated region
        $region37: #{tpu_custom_call.1} parent=23 // pred_check
          %p342 = pneg %p153
        $region38: #{tpu_custom_call.1} parent=23 // pred_check_branch
          %344 = sbr.rel (%p342) target = $region40
        $region39: #{tpu_custom_call.1} parent=23 // pred_region
          %s345 = sand.u32 %s24, 1
          %s346 = scalar_lea.sflag [#allocation10], %s345
          %s347 = sand.u32 %s143, 1
          %s348 = smul.addr %s347, 32
          %s349 = scalar_lea.vmem [#allocation9], %s348
          %s350 = smul.u32 4, %s33
          %s352 = ssub.s32 512, 512
          %353 = vsyncadd %s346, %s352
          %s354 = sadd.s32 %s32, %s350
          %s355 = smul.addr %s31, 4
          %s356 = sadd.s32 %s354, %s355
          %s357 = smul.addr %s356, 128
          %s358 = scalar_lea.hbm %s3, %s357
          %s359 = sshll.u32 %s349, 4
          %s360 = int_to_ptr.vmem [resolvable:$true] %s359
          %365 = dma.hbm_to_vmem [thread:$0]  %s358, 512, %s360, %s346, 128, 128, 8
        $region40: #{tpu_custom_call.1} parent=23 // pred_fallthru
          _
      $region24: #{tpu_custom_call.1} parent=5 // pred_fallthru
        _
      %p366 = scmp.le.s32.totalorder 1, %s24
      %p367 = scmp.lt.s32.totalorder %s24, 3
      %p368 = pnand %p366, %p367
      %p369 = pneg %p368
      // Predicated region
      $region41: #{tpu_custom_call.1} parent=5 // pred_check
        _
      $region42: #{tpu_custom_call.1} parent=5 // pred_check_branch
        %371 = sbr.rel (%p368) target = $region44
      $region43: #{tpu_custom_call.1} parent=5 // pred_region
        %s372 = ssub.s32 %s24, 1
        %s373 = sand.u32 %s60, 1
        %s374 = scalar_lea.sflag [#allocation4], %s373
        %s375 = sand.u32 %s60, 1
        %s376 = smul.addr %s375, 32
        %s377 = scalar_lea.vmem [#allocation3], %s376
        // Predicated region
        $region45: #{tpu_custom_call.1} parent=43 // pred_check
          %p378 = pneg %p73
        $region46: #{tpu_custom_call.1} parent=43 // pred_check_branch
          %380 = sbr.rel (%p378) target = $region48
        $region47: #{tpu_custom_call.1} parent=43 // pred_region
          %381 = dma.done %s374, 512
        $region48: #{tpu_custom_call.1} parent=43 // pred_fallthru
          _
        %s382 = sand.u32 %s29, 1
        %s383 = scalar_lea.sflag [#allocation7], %s382
        %s384 = sand.u32 %s88, 1
        %s385 = smul.addr %s384, 32
        %s386 = scalar_lea.vmem [#allocation6], %s385
        // Predicated region
        $region49: #{tpu_custom_call.1} parent=43 // pred_check
          %p387 = pneg %p101
        $region50: #{tpu_custom_call.1} parent=43 // pred_check_branch
          %389 = sbr.rel (%p387) target = $region52
        $region51: #{tpu_custom_call.1} parent=43 // pred_region
          %390 = dma.done %s383, 512
        $region52: #{tpu_custom_call.1} parent=43 // pred_fallthru
          _
        %s391 = sand.u32 %s29, 1
        %s392 = scalar_lea.sflag [#allocation7], %s391
        %s393 = sand.u32 %s116, 1
        %s394 = smul.addr %s393, 32
        %s395 = scalar_lea.vmem [#allocation8], %s394
        // Predicated region
        $region53: #{tpu_custom_call.1} parent=43 // pred_check
          %p396 = pneg %p129
        $region54: #{tpu_custom_call.1} parent=43 // pred_check_branch
          %398 = sbr.rel (%p396) target = $region56
        $region55: #{tpu_custom_call.1} parent=43 // pred_region
          %399 = dma.done %s392, 512
        $region56: #{tpu_custom_call.1} parent=43 // pred_fallthru
          _
        %s400 = sand.u32 %s29, 1
        %s401 = scalar_lea.sflag [#allocation10], %s400
        %s402 = sand.u32 %s146, 1
        %s403 = smul.addr %s402, 32
        %s404 = scalar_lea.vmem [#allocation9], %s403
        // Predicated region
        $region57: #{tpu_custom_call.1} parent=43 // pred_check
          %p405 = pneg %p159
        $region58: #{tpu_custom_call.1} parent=43 // pred_check_branch
          %407 = sbr.rel (%p405) target = $region60
        $region59: #{tpu_custom_call.1} parent=43 // pred_region
          %408 = dma.done %s401, 512
        $region60: #{tpu_custom_call.1} parent=43 // pred_fallthru
          _
        // Predicated region
        $region61: #{tpu_custom_call.1} parent=43 // pred_check
          %p409 = pneg %p185
        $region62: #{tpu_custom_call.1} parent=43 // pred_check_branch
          %411 = sbr.rel (%p409) target = $region64
        $region63: #{tpu_custom_call.1} parent=43 // pred_region
          %412 = dma.done [#allocation10], 512
        $region64: #{tpu_custom_call.1} parent=43 // pred_fallthru
          _
        %s413 = sand.u32 %s60, 1
        %s414 = scalar_lea.sflag [#allocation4], %s413
        %s415 = sand.u32 %s60, 1
        %s416 = smul.addr %s415, 32
        %s417 = scalar_lea.vmem [#allocation3], %s416
        %p418 = pneg %p73
        %p419 = pneg %p70
        %s420 = sand.u32 %s29, 1
        %s421 = scalar_lea.sflag [#allocation7], %s420
        %s422 = sand.u32 %s88, 1
        %s423 = smul.addr %s422, 32
        %s424 = scalar_lea.vmem [#allocation6], %s423
        %p425 = pneg %p101
        %p426 = pneg %p98
        %s427 = sand.u32 %s29, 1
        %s428 = scalar_lea.sflag [#allocation7], %s427
        %s429 = sand.u32 %s116, 1
        %s430 = smul.addr %s429, 32
        %s431 = scalar_lea.vmem [#allocation8], %s430
        %p432 = pneg %p129
        %p433 = pneg %p126
        %s434 = sand.u32 %s29, 1
        %s435 = scalar_lea.sflag [#allocation10], %s434
        %s436 = sand.u32 %s146, 1
        %s437 = smul.addr %s436, 32
        %s438 = scalar_lea.vmem [#allocation9], %s437
        %p439 = pneg %p159
        %p440 = pneg %p156
        %p441 = pneg %p185
        %p442 = pneg %p182
        %p443 = pneg %p206
        %p444 = pneg %p203
        %p445 = pneg %p234
        %p446 = pneg %p231
        %s447 = sand.u32 %s221, 1
        %s448 = scalar_lea.sflag [#allocation5], %s447
        %s449 = sand.u32 %s221, 1
        %s450 = smul.addr %s449, 8
        %s451 = scalar_lea.vmem [#allocation12], %s450
        %s452 = smul.u32 4, %s36
        %s453 = smul.u32 4, %s36
        %s454 = smul.u32 4, %s36
        %s455 = smul.u32 4, %s36
        %s456 = smul.u32 4, %s36
        %p457 = scmp.eq.s32.totalorder %s36, 0
        // Predicated region
        $region65: #{tpu_custom_call.1} parent=43 // pred_check
          %p458 = pneg %p457
        $region66: #{tpu_custom_call.1} parent=43 // pred_check_branch
          %460 = sbr.rel (%p458) target = $region68
        $region67: #{tpu_custom_call.1} parent=43 // pred_region
          %vm461 = vcmask 261120
          %462 = vst.msk [vmem:[#allocation2] sm:$0xff] %vm461, 0.0
        $region68: #{tpu_custom_call.1} parent=43 // pred_fallthru
          _
        %v463 = vld [vmem:[%s377] sm:$0xff]
        %v464 = vld [vmem:[%s377 + $0x8] sm:$0xff]
        %v465 = vld [vmem:[%s377 + $0x10] sm:$0xff]
        %v466 = vld [vmem:[%s377 + $0x18] sm:$0xff]
        %v467 = vld [vmem:[%s386] sm:$0xff]
        %v468 = vld [vmem:[%s386 + $0x8] sm:$0xff]
        %v469 = vld [vmem:[%s386 + $0x10] sm:$0xff]
        %v470 = vld [vmem:[%s386 + $0x18] sm:$0xff]
        %v471 = vld [vmem:[%s395] sm:$0xff]
        %v472 = vld [vmem:[%s395 + $0x8] sm:$0xff]
        %v473 = vld [vmem:[%s395 + $0x10] sm:$0xff]
        %v474 = vld [vmem:[%s395 + $0x18] sm:$0xff]
        %v475 = vld [vmem:[%s404] sm:$0xff]
        %v476 = vld [vmem:[%s404 + $0x8] sm:$0xff]
        %v477 = vld [vmem:[%s404 + $0x10] sm:$0xff]
        %v478 = vld [vmem:[%s404 + $0x18] sm:$0xff]
        %vm479 = vcmask 64512
        %v481 = vsel %vm479, %v463, 0
        %v484 = vsel %vm479, %v467, 0
        %486 = vmatprep.subr.mxu0 0.0
        %487 = vmatpush1.xpose.msra.mxu0 0.0
        %488 = vmatprep.subr.mxu0 0.0
        %489 = vmatpush1.xpose.msra.mxu0 0.0
        %490 = vmatprep.subr.mxu0 0.0
        %491 = vmatpush1.xpose.msra.mxu0 0.0
        %492 = vmatprep.subr.mxu0 0.0
        %493 = vmatpush1.xpose.msra.mxu0 0.0
        %494 = vmatprep.subr.mxu0 0.0
        %495 = vmatpush1.xpose.msra.mxu0 0.0
        %496 = vmatprep.subr.mxu0 0.0
        %497 = vmatpush1.xpose.msra.mxu0 0.0
        %498 = vmatprep.subr.mxu0 0.0
        %499 = vmatpush1.xpose.msra.mxu0 0.0
        %500 = vmatprep.subr.mxu0 0.0
        %501 = vmatpush1.xpose.msra.mxu0 0.0
        %502 = vmatprep.subr.mxu0 0.0
        %503 = vmatpush1.xpose.msra.mxu0 0.0
        %504 = vmatprep.subr.mxu0 0.0
        %505 = vmatpush1.xpose.msra.mxu0 0.0
        %506 = vmatprep.subr.mxu0 0.0
        %507 = vmatpush1.xpose.msra.mxu0 0.0
        %508 = vmatprep.subr.mxu0 0.0
        %509 = vmatpush1.xpose.msra.mxu0 0.0
        %510 = vmatprep.subr.mxu0 0.0
        %511 = vmatpush1.xpose.msra.mxu0 0.0
        %512 = vmatprep.subr.mxu0 0.0
        %513 = vmatpush1.xpose.msra.mxu0 0.0
        %514 = vmatprep.subr.mxu0 0.0
        %515 = vmatpush1.xpose.msra.mxu0 0.0
        %516 = vmatprep.subr.mxu0 0.0
        %517 = vmatpush1.xpose.msra.mxu0 %v484
        %518 = vmatprep.subr.mxu0 0.0
        %519 = vmatpush2.xpose.msra.mxu0 0.0
        %520 = vmatprep.subr.mxu0 0.0
        %521 = vmatpush2.xpose.msra.mxu0 0.0
        %522 = vmatprep.subr.mxu0 0.0
        %523 = vmatpush2.xpose.msra.mxu0 0.0
        %524 = vmatprep.subr.mxu0 0.0
        %525 = vmatpush2.xpose.msra.mxu0 0.0
        %526 = vmatprep.subr.mxu0 0.0
        %527 = vmatpush2.xpose.msra.mxu0 0.0
        %528 = vmatprep.subr.mxu0 0.0
        %529 = vmatpush2.xpose.msra.mxu0 0.0
        %530 = vmatprep.subr.mxu0 0.0
        %531 = vmatpush2.xpose.msra.mxu0 0.0
        %532 = vmatprep.subr.mxu0 0.0
        %533 = vmatpush2.xpose.msra.mxu0 0.0
        %534 = vmatprep.subr.mxu0 0.0
        %535 = vmatpush2.xpose.msra.mxu0 0.0
        %536 = vmatprep.subr.mxu0 0.0
        %537 = vmatpush2.xpose.msra.mxu0 0.0
        %538 = vmatprep.subr.mxu0 0.0
        %539 = vmatpush2.xpose.msra.mxu0 0.0
        %540 = vmatprep.subr.mxu0 0.0
        %541 = vmatpush2.xpose.msra.mxu0 0.0
        %542 = vmatprep.subr.mxu0 0.0
        %543 = vmatpush2.xpose.msra.mxu0 0.0
        %544 = vmatprep.subr.mxu0 0.0
        %545 = vmatpush2.xpose.msra.mxu0 0.0
        %546 = vmatprep.subr.mxu0 0.0
        %547 = vmatpush2.xpose.msra.mxu0 0.0
        %548 = vmatprep.subr.mxu0 0.0
        %549 = vmatpush2.xpose.msra.mxu0 0.0
        %550 = vmatprep.mubr.f32.mxu0 0.0
        %551 = vmatmul.mubr.f32.gmra.mxu0 %v481
        %v552 = vpop.f32.mrf.mxu0
        %v553 = vadd.f32 %v475, %v552
        %v554 = vpop.f32.mrf.mxu0
        %555 = vdwg.mxu0
        %v557 = vsel %vm479, %v464, 0
        %v560 = vsel %vm479, %v468, 0
        %562 = vmatprep.subr.mxu0 0.0
        %563 = vmatpush1.xpose.msra.mxu0 0.0
        %564 = vmatprep.subr.mxu0 0.0
        %565 = vmatpush1.xpose.msra.mxu0 0.0
        %566 = vmatprep.subr.mxu0 0.0
        %567 = vmatpush1.xpose.msra.mxu0 0.0
        %568 = vmatprep.subr.mxu0 0.0
        %569 = vmatpush1.xpose.msra.mxu0 0.0
        %570 = vmatprep.subr.mxu0 0.0
        %571 = vmatpush1.xpose.msra.mxu0 0.0
        %572 = vmatprep.subr.mxu0 0.0
        %573 = vmatpush1.xpose.msra.mxu0 0.0
        %574 = vmatprep.subr.mxu0 0.0
        %575 = vmatpush1.xpose.msra.mxu0 0.0
        %576 = vmatprep.subr.mxu0 0.0
        %577 = vmatpush1.xpose.msra.mxu0 0.0
        %578 = vmatprep.subr.mxu0 0.0
        %579 = vmatpush1.xpose.msra.mxu0 0.0
        %580 = vmatprep.subr.mxu0 0.0
        %581 = vmatpush1.xpose.msra.mxu0 0.0
        %582 = vmatprep.subr.mxu0 0.0
        %583 = vmatpush1.xpose.msra.mxu0 0.0
        %584 = vmatprep.subr.mxu0 0.0
        %585 = vmatpush1.xpose.msra.mxu0 0.0
        %586 = vmatprep.subr.mxu0 0.0
        %587 = vmatpush1.xpose.msra.mxu0 0.0
        %588 = vmatprep.subr.mxu0 0.0
        %589 = vmatpush1.xpose.msra.mxu0 0.0
        %590 = vmatprep.subr.mxu0 0.0
        %591 = vmatpush1.xpose.msra.mxu0 0.0
        %592 = vmatprep.subr.mxu0 0.0
        %593 = vmatpush1.xpose.msra.mxu0 %v560
        %594 = vmatprep.subr.mxu0 0.0
        %595 = vmatpush2.xpose.msra.mxu0 0.0
        %596 = vmatprep.subr.mxu0 0.0
        %597 = vmatpush2.xpose.msra.mxu0 0.0
        %598 = vmatprep.subr.mxu0 0.0
        %599 = vmatpush2.xpose.msra.mxu0 0.0
        %600 = vmatprep.subr.mxu0 0.0
        %601 = vmatpush2.xpose.msra.mxu0 0.0
        %602 = vmatprep.subr.mxu0 0.0
        %603 = vmatpush2.xpose.msra.mxu0 0.0
        %604 = vmatprep.subr.mxu0 0.0
        %605 = vmatpush2.xpose.msra.mxu0 0.0
        %606 = vmatprep.subr.mxu0 0.0
        %607 = vmatpush2.xpose.msra.mxu0 0.0
        %608 = vmatprep.subr.mxu0 0.0
        %609 = vmatpush2.xpose.msra.mxu0 0.0
        %610 = vmatprep.subr.mxu0 0.0
        %611 = vmatpush2.xpose.msra.mxu0 0.0
        %612 = vmatprep.subr.mxu0 0.0
        %613 = vmatpush2.xpose.msra.mxu0 0.0
        %614 = vmatprep.subr.mxu0 0.0
        %615 = vmatpush2.xpose.msra.mxu0 0.0
        %616 = vmatprep.subr.mxu0 0.0
        %617 = vmatpush2.xpose.msra.mxu0 0.0
        %618 = vmatprep.subr.mxu0 0.0
        %619 = vmatpush2.xpose.msra.mxu0 0.0
        %620 = vmatprep.subr.mxu0 0.0
        %621 = vmatpush2.xpose.msra.mxu0 0.0
        %622 = vmatprep.subr.mxu0 0.0
        %623 = vmatpush2.xpose.msra.mxu0 0.0
        %624 = vmatprep.subr.mxu0 0.0
        %625 = vmatpush2.xpose.msra.mxu0 0.0
        %626 = vmatprep.mubr.f32.mxu0 0.0
        %627 = vmatmul.mubr.f32.gmra.mxu0 %v557
        %v628 = vpop.f32.mrf.mxu0
        %v629 = vadd.f32 %v476, %v628
        %v630 = vpop.f32.mrf.mxu0
        %631 = vdwg.mxu0
        %v633 = vsel %vm479, %v465, 0
        %v636 = vsel %vm479, %v469, 0
        %638 = vmatprep.subr.mxu0 0.0
        %639 = vmatpush1.xpose.msra.mxu0 0.0
        %640 = vmatprep.subr.mxu0 0.0
        %641 = vmatpush1.xpose.msra.mxu0 0.0
        %642 = vmatprep.subr.mxu0 0.0
        %643 = vmatpush1.xpose.msra.mxu0 0.0
        %644 = vmatprep.subr.mxu0 0.0
        %645 = vmatpush1.xpose.msra.mxu0 0.0
        %646 = vmatprep.subr.mxu0 0.0
        %647 = vmatpush1.xpose.msra.mxu0 0.0
        %648 = vmatprep.subr.mxu0 0.0
        %649 = vmatpush1.xpose.msra.mxu0 0.0
        %650 = vmatprep.subr.mxu0 0.0
        %651 = vmatpush1.xpose.msra.mxu0 0.0
        %652 = vmatprep.subr.mxu0 0.0
        %653 = vmatpush1.xpose.msra.mxu0 0.0
        %654 = vmatprep.subr.mxu0 0.0
        %655 = vmatpush1.xpose.msra.mxu0 0.0
        %656 = vmatprep.subr.mxu0 0.0
        %657 = vmatpush1.xpose.msra.mxu0 0.0
        %658 = vmatprep.subr.mxu0 0.0
        %659 = vmatpush1.xpose.msra.mxu0 0.0
        %660 = vmatprep.subr.mxu0 0.0
        %661 = vmatpush1.xpose.msra.mxu0 0.0
        %662 = vmatprep.subr.mxu0 0.0
        %663 = vmatpush1.xpose.msra.mxu0 0.0
        %664 = vmatprep.subr.mxu0 0.0
        %665 = vmatpush1.xpose.msra.mxu0 0.0
        %666 = vmatprep.subr.mxu0 0.0
        %667 = vmatpush1.xpose.msra.mxu0 0.0
        %668 = vmatprep.subr.mxu0 0.0
        %669 = vmatpush1.xpose.msra.mxu0 %v636
        %670 = vmatprep.subr.mxu0 0.0
        %671 = vmatpush2.xpose.msra.mxu0 0.0
        %672 = vmatprep.subr.mxu0 0.0
        %673 = vmatpush2.xpose.msra.mxu0 0.0
        %674 = vmatprep.subr.mxu0 0.0
        %675 = vmatpush2.xpose.msra.mxu0 0.0
        %676 = vmatprep.subr.mxu0 0.0
        %677 = vmatpush2.xpose.msra.mxu0 0.0
        %678 = vmatprep.subr.mxu0 0.0
        %679 = vmatpush2.xpose.msra.mxu0 0.0
        %680 = vmatprep.subr.mxu0 0.0
        %681 = vmatpush2.xpose.msra.mxu0 0.0
        %682 = vmatprep.subr.mxu0 0.0
        %683 = vmatpush2.xpose.msra.mxu0 0.0
        %684 = vmatprep.subr.mxu0 0.0
        %685 = vmatpush2.xpose.msra.mxu0 0.0
        %686 = vmatprep.subr.mxu0 0.0
        %687 = vmatpush2.xpose.msra.mxu0 0.0
        %688 = vmatprep.subr.mxu0 0.0
        %689 = vmatpush2.xpose.msra.mxu0 0.0
        %690 = vmatprep.subr.mxu0 0.0
        %691 = vmatpush2.xpose.msra.mxu0 0.0
        %692 = vmatprep.subr.mxu0 0.0
        %693 = vmatpush2.xpose.msra.mxu0 0.0
        %694 = vmatprep.subr.mxu0 0.0
        %695 = vmatpush2.xpose.msra.mxu0 0.0
        %696 = vmatprep.subr.mxu0 0.0
        %697 = vmatpush2.xpose.msra.mxu0 0.0
        %698 = vmatprep.subr.mxu0 0.0
        %699 = vmatpush2.xpose.msra.mxu0 0.0
        %700 = vmatprep.subr.mxu0 0.0
        %701 = vmatpush2.xpose.msra.mxu0 0.0
        %702 = vmatprep.mubr.f32.mxu0 0.0
        %703 = vmatmul.mubr.f32.gmra.mxu0 %v633
        %v704 = vpop.f32.mrf.mxu0
        %v705 = vadd.f32 %v477, %v704
        %v706 = vpop.f32.mrf.mxu0
        %707 = vdwg.mxu0
        %v709 = vsel %vm479, %v466, 0
        %v712 = vsel %vm479, %v470, 0
        %714 = vmatprep.subr.mxu0 0.0
        %715 = vmatpush1.xpose.msra.mxu0 0.0
        %716 = vmatprep.subr.mxu0 0.0
        %717 = vmatpush1.xpose.msra.mxu0 0.0
        %718 = vmatprep.subr.mxu0 0.0
        %719 = vmatpush1.xpose.msra.mxu0 0.0
        %720 = vmatprep.subr.mxu0 0.0
        %721 = vmatpush1.xpose.msra.mxu0 0.0
        %722 = vmatprep.subr.mxu0 0.0
        %723 = vmatpush1.xpose.msra.mxu0 0.0
        %724 = vmatprep.subr.mxu0 0.0
        %725 = vmatpush1.xpose.msra.mxu0 0.0
        %726 = vmatprep.subr.mxu0 0.0
        %727 = vmatpush1.xpose.msra.mxu0 0.0
        %728 = vmatprep.subr.mxu0 0.0
        %729 = vmatpush1.xpose.msra.mxu0 0.0
        %730 = vmatprep.subr.mxu0 0.0
        %731 = vmatpush1.xpose.msra.mxu0 0.0
        %732 = vmatprep.subr.mxu0 0.0
        %733 = vmatpush1.xpose.msra.mxu0 0.0
        %734 = vmatprep.subr.mxu0 0.0
        %735 = vmatpush1.xpose.msra.mxu0 0.0
        %736 = vmatprep.subr.mxu0 0.0
        %737 = vmatpush1.xpose.msra.mxu0 0.0
        %738 = vmatprep.subr.mxu0 0.0
        %739 = vmatpush1.xpose.msra.mxu0 0.0
        %740 = vmatprep.subr.mxu0 0.0
        %741 = vmatpush1.xpose.msra.mxu0 0.0
        %742 = vmatprep.subr.mxu0 0.0
        %743 = vmatpush1.xpose.msra.mxu0 0.0
        %744 = vmatprep.subr.mxu0 0.0
        %745 = vmatpush1.xpose.msra.mxu0 %v712
        %746 = vmatprep.subr.mxu0 0.0
        %747 = vmatpush2.xpose.msra.mxu0 0.0
        %748 = vmatprep.subr.mxu0 0.0
        %749 = vmatpush2.xpose.msra.mxu0 0.0
        %750 = vmatprep.subr.mxu0 0.0
        %751 = vmatpush2.xpose.msra.mxu0 0.0
        %752 = vmatprep.subr.mxu0 0.0
        %753 = vmatpush2.xpose.msra.mxu0 0.0
        %754 = vmatprep.subr.mxu0 0.0
        %755 = vmatpush2.xpose.msra.mxu0 0.0
        %756 = vmatprep.subr.mxu0 0.0
        %757 = vmatpush2.xpose.msra.mxu0 0.0
        %758 = vmatprep.subr.mxu0 0.0
        %759 = vmatpush2.xpose.msra.mxu0 0.0
        %760 = vmatprep.subr.mxu0 0.0
        %761 = vmatpush2.xpose.msra.mxu0 0.0
        %762 = vmatprep.subr.mxu0 0.0
        %763 = vmatpush2.xpose.msra.mxu0 0.0
        %764 = vmatprep.subr.mxu0 0.0
        %765 = vmatpush2.xpose.msra.mxu0 0.0
        %766 = vmatprep.subr.mxu0 0.0
        %767 = vmatpush2.xpose.msra.mxu0 0.0
        %768 = vmatprep.subr.mxu0 0.0
        %769 = vmatpush2.xpose.msra.mxu0 0.0
        %770 = vmatprep.subr.mxu0 0.0
        %771 = vmatpush2.xpose.msra.mxu0 0.0
        %772 = vmatprep.subr.mxu0 0.0
        %773 = vmatpush2.xpose.msra.mxu0 0.0
        %774 = vmatprep.subr.mxu0 0.0
        %775 = vmatpush2.xpose.msra.mxu0 0.0
        %776 = vmatprep.subr.mxu0 0.0
        %777 = vmatpush2.xpose.msra.mxu0 0.0
        %778 = vmatprep.mubr.f32.mxu0 0.0
        %779 = vmatmul.mubr.f32.gmra.mxu0 %v709
        %v780 = vpop.f32.mrf.mxu0
        %v781 = vadd.f32 %v478, %v780
        %v782 = vpop.f32.mrf.mxu0
        %783 = vdwg.mxu0
        %v784 = vsel %vm479, %v553, -inf
        %785 = vmax.xlane.f32.xlu0 %v784
        %v786 = vpop.xlane.xlu0 %785
        %v787 = vsel %vm479, %v629, -inf
        %788 = vmax.xlane.f32.xlu0 %v787
        %v789 = vpop.xlane.xlu0 %788
        %v790 = vsel %vm479, %v705, -inf
        %791 = vmax.xlane.f32.xlu0 %v790
        %v792 = vpop.xlane.xlu0 %791
        %v793 = vsel %vm479, %v781, -inf
        %794 = vmax.xlane.f32.xlu0 %v793
        %v795 = vpop.xlane.xlu0 %794
        %v796 = vsub.f32 %v553, %v786
        %v797 = vsub.f32 %v629, %v789
        %v798 = vsub.f32 %v705, %v792
        %v799 = vsub.f32 %v781, %v795
        %v800 = vmul.f32 %v796, 1.442695
        %v801 = vpow.pop %v800
        %v802 = vmul.f32 %v797, 1.442695
        %v803 = vpow.pop %v802
        %v804 = vmul.f32 %v798, 1.442695
        %v805 = vpow.pop %v804
        %v806 = vmul.f32 %v799, 1.442695
        %v807 = vpow.pop %v806
        %v808 = vsel %vm479, %v801, 0.0
        %809 = vadd.xlane.f32.xlu0 %v808
        %v810 = vpop.xlane.xlu0 %809
        %v811 = vsel %vm479, %v803, 0.0
        %812 = vadd.xlane.f32.xlu0 %v811
        %v813 = vpop.xlane.xlu0 %812
        %v814 = vsel %vm479, %v805, 0.0
        %815 = vadd.xlane.f32.xlu0 %v814
        %v816 = vpop.xlane.xlu0 %815
        %v817 = vsel %vm479, %v807, 0.0
        %818 = vadd.xlane.f32.xlu0 %v817
        %v819 = vpop.xlane.xlu0 %818
        %v820 = vrcp.pop %v810
        %v821 = vmul.f32 %v801, %v820
        %v822 = vrcp.pop %v813
        %v823 = vmul.f32 %v803, %v822
        %v824 = vrcp.pop %v816
        %v825 = vmul.f32 %v805, %v824
        %v826 = vrcp.pop %v819
        %v827 = vmul.f32 %v807, %v826
        %v829 = vsel %vm479, %v821, 0
        %831 = vmatprep.subr.mxu0 0.0
        %832 = vmatpush1.msra.mxu0 0.0
        %833 = vmatprep.subr.mxu0 0.0
        %834 = vmatpush1.msra.mxu0 0.0
        %835 = vmatprep.subr.mxu0 0.0
        %836 = vmatpush1.msra.mxu0 0.0
        %837 = vmatprep.subr.mxu0 0.0
        %838 = vmatpush1.msra.mxu0 0.0
        %839 = vmatprep.subr.mxu0 0.0
        %840 = vmatpush1.msra.mxu0 0.0
        %841 = vmatprep.subr.mxu0 0.0
        %842 = vmatpush1.msra.mxu0 0.0
        %843 = vmatprep.subr.mxu0 0.0
        %844 = vmatpush1.msra.mxu0 0.0
        %845 = vmatprep.subr.mxu0 0.0
        %846 = vmatpush1.msra.mxu0 0.0
        %847 = vmatprep.subr.mxu0 0.0
        %848 = vmatpush1.msra.mxu0 0.0
        %849 = vmatprep.subr.mxu0 0.0
        %850 = vmatpush1.msra.mxu0 0.0
        %851 = vmatprep.subr.mxu0 0.0
        %852 = vmatpush1.msra.mxu0 0.0
        %853 = vmatprep.subr.mxu0 0.0
        %854 = vmatpush1.msra.mxu0 0.0
        %855 = vmatprep.subr.mxu0 0.0
        %856 = vmatpush1.msra.mxu0 0.0
        %857 = vmatprep.subr.mxu0 0.0
        %858 = vmatpush1.msra.mxu0 0.0
        %859 = vmatprep.subr.mxu0 0.0
        %860 = vmatpush1.msra.mxu0 0.0
        %861 = vmatprep.subr.mxu0 0.0
        %862 = vmatpush1.msra.mxu0 %v471
        %863 = vmatprep.subr.mxu0 0.0
        %864 = vmatpush2.msra.mxu0 0.0
        %865 = vmatprep.subr.mxu0 0.0
        %866 = vmatpush2.msra.mxu0 0.0
        %867 = vmatprep.subr.mxu0 0.0
        %868 = vmatpush2.msra.mxu0 0.0
        %869 = vmatprep.subr.mxu0 0.0
        %870 = vmatpush2.msra.mxu0 0.0
        %871 = vmatprep.subr.mxu0 0.0
        %872 = vmatpush2.msra.mxu0 0.0
        %873 = vmatprep.subr.mxu0 0.0
        %874 = vmatpush2.msra.mxu0 0.0
        %875 = vmatprep.subr.mxu0 0.0
        %876 = vmatpush2.msra.mxu0 0.0
        %877 = vmatprep.subr.mxu0 0.0
        %878 = vmatpush2.msra.mxu0 0.0
        %879 = vmatprep.subr.mxu0 0.0
        %880 = vmatpush2.msra.mxu0 0.0
        %881 = vmatprep.subr.mxu0 0.0
        %882 = vmatpush2.msra.mxu0 0.0
        %883 = vmatprep.subr.mxu0 0.0
        %884 = vmatpush2.msra.mxu0 0.0
        %885 = vmatprep.subr.mxu0 0.0
        %886 = vmatpush2.msra.mxu0 0.0
        %887 = vmatprep.subr.mxu0 0.0
        %888 = vmatpush2.msra.mxu0 0.0
        %889 = vmatprep.subr.mxu0 0.0
        %890 = vmatpush2.msra.mxu0 0.0
        %891 = vmatprep.subr.mxu0 0.0
        %892 = vmatpush2.msra.mxu0 0.0
        %893 = vmatprep.subr.mxu0 0.0
        %894 = vmatpush2.msra.mxu0 0.0
        %895 = vmatprep.mubr.f32.mxu0 0.0
        %896 = vmatmul.mubr.f32.gmra.mxu0 %v829
        %v897 = vpop.f32.mrf.mxu0
        %v898 = vadd.f32 0.0, %v897
        %v899 = vpop.f32.mrf.mxu0
        %900 = vdwg.mxu0
        %v902 = vsel %vm479, %v823, 0
        %904 = vmatprep.subr.mxu0 0.0
        %905 = vmatpush1.msra.mxu0 0.0
        %906 = vmatprep.subr.mxu0 0.0
        %907 = vmatpush1.msra.mxu0 0.0
        %908 = vmatprep.subr.mxu0 0.0
        %909 = vmatpush1.msra.mxu0 0.0
        %910 = vmatprep.subr.mxu0 0.0
        %911 = vmatpush1.msra.mxu0 0.0
        %912 = vmatprep.subr.mxu0 0.0
        %913 = vmatpush1.msra.mxu0 0.0
        %914 = vmatprep.subr.mxu0 0.0
        %915 = vmatpush1.msra.mxu0 0.0
        %916 = vmatprep.subr.mxu0 0.0
        %917 = vmatpush1.msra.mxu0 0.0
        %918 = vmatprep.subr.mxu0 0.0
        %919 = vmatpush1.msra.mxu0 0.0
        %920 = vmatprep.subr.mxu0 0.0
        %921 = vmatpush1.msra.mxu0 0.0
        %922 = vmatprep.subr.mxu0 0.0
        %923 = vmatpush1.msra.mxu0 0.0
        %924 = vmatprep.subr.mxu0 0.0
        %925 = vmatpush1.msra.mxu0 0.0
        %926 = vmatprep.subr.mxu0 0.0
        %927 = vmatpush1.msra.mxu0 0.0
        %928 = vmatprep.subr.mxu0 0.0
        %929 = vmatpush1.msra.mxu0 0.0
        %930 = vmatprep.subr.mxu0 0.0
        %931 = vmatpush1.msra.mxu0 0.0
        %932 = vmatprep.subr.mxu0 0.0
        %933 = vmatpush1.msra.mxu0 0.0
        %934 = vmatprep.subr.mxu0 0.0
        %935 = vmatpush1.msra.mxu0 %v472
        %936 = vmatprep.subr.mxu0 0.0
        %937 = vmatpush2.msra.mxu0 0.0
        %938 = vmatprep.subr.mxu0 0.0
        %939 = vmatpush2.msra.mxu0 0.0
        %940 = vmatprep.subr.mxu0 0.0
        %941 = vmatpush2.msra.mxu0 0.0
        %942 = vmatprep.subr.mxu0 0.0
        %943 = vmatpush2.msra.mxu0 0.0
        %944 = vmatprep.subr.mxu0 0.0
        %945 = vmatpush2.msra.mxu0 0.0
        %946 = vmatprep.subr.mxu0 0.0
        %947 = vmatpush2.msra.mxu0 0.0
        %948 = vmatprep.subr.mxu0 0.0
        %949 = vmatpush2.msra.mxu0 0.0
        %950 = vmatprep.subr.mxu0 0.0
        %951 = vmatpush2.msra.mxu0 0.0
        %952 = vmatprep.subr.mxu0 0.0
        %953 = vmatpush2.msra.mxu0 0.0
        %954 = vmatprep.subr.mxu0 0.0
        %955 = vmatpush2.msra.mxu0 0.0
        %956 = vmatprep.subr.mxu0 0.0
        %957 = vmatpush2.msra.mxu0 0.0
        %958 = vmatprep.subr.mxu0 0.0
        %959 = vmatpush2.msra.mxu0 0.0
        %960 = vmatprep.subr.mxu0 0.0
        %961 = vmatpush2.msra.mxu0 0.0
        %962 = vmatprep.subr.mxu0 0.0
        %963 = vmatpush2.msra.mxu0 0.0
        %964 = vmatprep.subr.mxu0 0.0
        %965 = vmatpush2.msra.mxu0 0.0
        %966 = vmatprep.subr.mxu0 0.0
        %967 = vmatpush2.msra.mxu0 0.0
        %968 = vmatprep.mubr.f32.mxu0 0.0
        %969 = vmatmul.mubr.f32.gmra.mxu0 %v902
        %v970 = vpop.f32.mrf.mxu0
        %v971 = vadd.f32 0.0, %v970
        %v972 = vpop.f32.mrf.mxu0
        %973 = vdwg.mxu0
        %v975 = vsel %vm479, %v825, 0
        %977 = vmatprep.subr.mxu0 0.0
        %978 = vmatpush1.msra.mxu0 0.0
        %979 = vmatprep.subr.mxu0 0.0
        %980 = vmatpush1.msra.mxu0 0.0
        %981 = vmatprep.subr.mxu0 0.0
        %982 = vmatpush1.msra.mxu0 0.0
        %983 = vmatprep.subr.mxu0 0.0
        %984 = vmatpush1.msra.mxu0 0.0
        %985 = vmatprep.subr.mxu0 0.0
        %986 = vmatpush1.msra.mxu0 0.0
        %987 = vmatprep.subr.mxu0 0.0
        %988 = vmatpush1.msra.mxu0 0.0
        %989 = vmatprep.subr.mxu0 0.0
        %990 = vmatpush1.msra.mxu0 0.0
        %991 = vmatprep.subr.mxu0 0.0
        %992 = vmatpush1.msra.mxu0 0.0
        %993 = vmatprep.subr.mxu0 0.0
        %994 = vmatpush1.msra.mxu0 0.0
        %995 = vmatprep.subr.mxu0 0.0
        %996 = vmatpush1.msra.mxu0 0.0
        %997 = vmatprep.subr.mxu0 0.0
        %998 = vmatpush1.msra.mxu0 0.0
        %999 = vmatprep.subr.mxu0 0.0
        %1000 = vmatpush1.msra.mxu0 0.0
        %1001 = vmatprep.subr.mxu0 0.0
        %1002 = vmatpush1.msra.mxu0 0.0
        %1003 = vmatprep.subr.mxu0 0.0
        %1004 = vmatpush1.msra.mxu0 0.0
        %1005 = vmatprep.subr.mxu0 0.0
        %1006 = vmatpush1.msra.mxu0 0.0
        %1007 = vmatprep.subr.mxu0 0.0
        %1008 = vmatpush1.msra.mxu0 %v473
        %1009 = vmatprep.subr.mxu0 0.0
        %1010 = vmatpush2.msra.mxu0 0.0
        %1011 = vmatprep.subr.mxu0 0.0
        %1012 = vmatpush2.msra.mxu0 0.0
        %1013 = vmatprep.subr.mxu0 0.0
        %1014 = vmatpush2.msra.mxu0 0.0
        %1015 = vmatprep.subr.mxu0 0.0
        %1016 = vmatpush2.msra.mxu0 0.0
        %1017 = vmatprep.subr.mxu0 0.0
        %1018 = vmatpush2.msra.mxu0 0.0
        %1019 = vmatprep.subr.mxu0 0.0
        %1020 = vmatpush2.msra.mxu0 0.0
        %1021 = vmatprep.subr.mxu0 0.0
        %1022 = vmatpush2.msra.mxu0 0.0
        %1023 = vmatprep.subr.mxu0 0.0
        %1024 = vmatpush2.msra.mxu0 0.0
        %1025 = vmatprep.subr.mxu0 0.0
        %1026 = vmatpush2.msra.mxu0 0.0
        %1027 = vmatprep.subr.mxu0 0.0
        %1028 = vmatpush2.msra.mxu0 0.0
        %1029 = vmatprep.subr.mxu0 0.0
        %1030 = vmatpush2.msra.mxu0 0.0
        %1031 = vmatprep.subr.mxu0 0.0
        %1032 = vmatpush2.msra.mxu0 0.0
        %1033 = vmatprep.subr.mxu0 0.0
        %1034 = vmatpush2.msra.mxu0 0.0
        %1035 = vmatprep.subr.mxu0 0.0
        %1036 = vmatpush2.msra.mxu0 0.0
        %1037 = vmatprep.subr.mxu0 0.0
        %1038 = vmatpush2.msra.mxu0 0.0
        %1039 = vmatprep.subr.mxu0 0.0
        %1040 = vmatpush2.msra.mxu0 0.0
        %1041 = vmatprep.mubr.f32.mxu0 0.0
        %1042 = vmatmul.mubr.f32.gmra.mxu0 %v975
        %v1043 = vpop.f32.mrf.mxu0
        %v1044 = vadd.f32 0.0, %v1043
        %v1045 = vpop.f32.mrf.mxu0
        %1046 = vdwg.mxu0
        %v1048 = vsel %vm479, %v827, 0
        %1050 = vmatprep.subr.mxu0 0.0
        %1051 = vmatpush1.msra.mxu0 0.0
        %1052 = vmatprep.subr.mxu0 0.0
        %1053 = vmatpush1.msra.mxu0 0.0
        %1054 = vmatprep.subr.mxu0 0.0
        %1055 = vmatpush1.msra.mxu0 0.0
        %1056 = vmatprep.subr.mxu0 0.0
        %1057 = vmatpush1.msra.mxu0 0.0
        %1058 = vmatprep.subr.mxu0 0.0
        %1059 = vmatpush1.msra.mxu0 0.0
        %1060 = vmatprep.subr.mxu0 0.0
        %1061 = vmatpush1.msra.mxu0 0.0
        %1062 = vmatprep.subr.mxu0 0.0
        %1063 = vmatpush1.msra.mxu0 0.0
        %1064 = vmatprep.subr.mxu0 0.0
        %1065 = vmatpush1.msra.mxu0 0.0
        %1066 = vmatprep.subr.mxu0 0.0
        %1067 = vmatpush1.msra.mxu0 0.0
        %1068 = vmatprep.subr.mxu0 0.0
        %1069 = vmatpush1.msra.mxu0 0.0
        %1070 = vmatprep.subr.mxu0 0.0
        %1071 = vmatpush1.msra.mxu0 0.0
        %1072 = vmatprep.subr.mxu0 0.0
        %1073 = vmatpush1.msra.mxu0 0.0
        %1074 = vmatprep.subr.mxu0 0.0
        %1075 = vmatpush1.msra.mxu0 0.0
        %1076 = vmatprep.subr.mxu0 0.0
        %1077 = vmatpush1.msra.mxu0 0.0
        %1078 = vmatprep.subr.mxu0 0.0
        %1079 = vmatpush1.msra.mxu0 0.0
        %1080 = vmatprep.subr.mxu0 0.0
        %1081 = vmatpush1.msra.mxu0 %v474
        %1082 = vmatprep.subr.mxu0 0.0
        %1083 = vmatpush2.msra.mxu0 0.0
        %1084 = vmatprep.subr.mxu0 0.0
        %1085 = vmatpush2.msra.mxu0 0.0
        %1086 = vmatprep.subr.mxu0 0.0
        %1087 = vmatpush2.msra.mxu0 0.0
        %1088 = vmatprep.subr.mxu0 0.0
        %1089 = vmatpush2.msra.mxu0 0.0
        %1090 = vmatprep.subr.mxu0 0.0
        %1091 = vmatpush2.msra.mxu0 0.0
        %1092 = vmatprep.subr.mxu0 0.0
        %1093 = vmatpush2.msra.mxu0 0.0
        %1094 = vmatprep.subr.mxu0 0.0
        %1095 = vmatpush2.msra.mxu0 0.0
        %1096 = vmatprep.subr.mxu0 0.0
        %1097 = vmatpush2.msra.mxu0 0.0
        %1098 = vmatprep.subr.mxu0 0.0
        %1099 = vmatpush2.msra.mxu0 0.0
        %1100 = vmatprep.subr.mxu0 0.0
        %1101 = vmatpush2.msra.mxu0 0.0
        %1102 = vmatprep.subr.mxu0 0.0
        %1103 = vmatpush2.msra.mxu0 0.0
        %1104 = vmatprep.subr.mxu0 0.0
        %1105 = vmatpush2.msra.mxu0 0.0
        %1106 = vmatprep.subr.mxu0 0.0
        %1107 = vmatpush2.msra.mxu0 0.0
        %1108 = vmatprep.subr.mxu0 0.0
        %1109 = vmatpush2.msra.mxu0 0.0
        %1110 = vmatprep.subr.mxu0 0.0
        %1111 = vmatpush2.msra.mxu0 0.0
        %1112 = vmatprep.subr.mxu0 0.0
        %1113 = vmatpush2.msra.mxu0 0.0
        %1114 = vmatprep.mubr.f32.mxu0 0.0
        %1115 = vmatmul.mubr.f32.gmra.mxu0 %v1048
        %v1116 = vpop.f32.mrf.mxu0
        %v1117 = vadd.f32 0.0, %v1116
        %v1118 = vpop.f32.mrf.mxu0
        %1119 = vdwg.mxu0
        %v1120 = vld [vmem:[#allocation11] sm:$0xff]
        %v1121 = vld [vmem:[#allocation11 + $0x8] sm:$0xff]
        %v1122 = vld [vmem:[#allocation11 + $0x10] sm:$0xff]
        %v1123 = vld [vmem:[#allocation11 + $0x18] sm:$0xff]
        %v1125 = vsel %vm479, %v971, 0
        %1127 = vmatprep.subr.mxu0 0.0
        %1128 = vmatpush1.msra.mxu0 0.0
        %1129 = vmatprep.subr.mxu0 0.0
        %1130 = vmatpush1.msra.mxu0 0.0
        %1131 = vmatprep.subr.mxu0 0.0
        %1132 = vmatpush1.msra.mxu0 0.0
        %1133 = vmatprep.subr.mxu0 0.0
        %1134 = vmatpush1.msra.mxu0 0.0
        %1135 = vmatprep.subr.mxu0 0.0
        %1136 = vmatpush1.msra.mxu0 0.0
        %1137 = vmatprep.subr.mxu0 0.0
        %1138 = vmatpush1.msra.mxu0 0.0
        %1139 = vmatprep.subr.mxu0 0.0
        %1140 = vmatpush1.msra.mxu0 0.0
        %1141 = vmatprep.subr.mxu0 0.0
        %1142 = vmatpush1.msra.mxu0 0.0
        %1143 = vmatprep.subr.mxu0 0.0
        %1144 = vmatpush1.msra.mxu0 0.0
        %1145 = vmatprep.subr.mxu0 0.0
        %1146 = vmatpush1.msra.mxu0 0.0
        %1147 = vmatprep.subr.mxu0 0.0
        %1148 = vmatpush1.msra.mxu0 0.0
        %1149 = vmatprep.subr.mxu0 0.0
        %1150 = vmatpush1.msra.mxu0 0.0
        %1151 = vmatprep.subr.mxu0 0.0
        %1152 = vmatpush1.msra.mxu0 0.0
        %1153 = vmatprep.subr.mxu0 0.0
        %1154 = vmatpush1.msra.mxu0 0.0
        %1155 = vmatprep.subr.mxu0 0.0
        %1156 = vmatpush1.msra.mxu0 0.0
        %1157 = vmatprep.subr.mxu0 0.0
        %1158 = vmatpush1.msra.mxu0 %v1121
        %1159 = vmatprep.subr.mxu0 0.0
        %1160 = vmatpush2.msra.mxu0 0.0
        %1161 = vmatprep.subr.mxu0 0.0
        %1162 = vmatpush2.msra.mxu0 0.0
        %1163 = vmatprep.subr.mxu0 0.0
        %1164 = vmatpush2.msra.mxu0 0.0
        %1165 = vmatprep.subr.mxu0 0.0
        %1166 = vmatpush2.msra.mxu0 0.0
        %1167 = vmatprep.subr.mxu0 0.0
        %1168 = vmatpush2.msra.mxu0 0.0
        %1169 = vmatprep.subr.mxu0 0.0
        %1170 = vmatpush2.msra.mxu0 0.0
        %1171 = vmatprep.subr.mxu0 0.0
        %1172 = vmatpush2.msra.mxu0 0.0
        %1173 = vmatprep.subr.mxu0 0.0
        %1174 = vmatpush2.msra.mxu0 0.0
        %1175 = vmatprep.subr.mxu0 0.0
        %1176 = vmatpush2.msra.mxu0 0.0
        %1177 = vmatprep.subr.mxu0 0.0
        %1178 = vmatpush2.msra.mxu0 0.0
        %1179 = vmatprep.subr.mxu0 0.0
        %1180 = vmatpush2.msra.mxu0 0.0
        %1181 = vmatprep.subr.mxu0 0.0
        %1182 = vmatpush2.msra.mxu0 0.0
        %1183 = vmatprep.subr.mxu0 0.0
        %1184 = vmatpush2.msra.mxu0 0.0
        %1185 = vmatprep.subr.mxu0 0.0
        %1186 = vmatpush2.msra.mxu0 0.0
        %1187 = vmatprep.subr.mxu0 0.0
        %1188 = vmatpush2.msra.mxu0 0.0
        %1189 = vmatprep.subr.mxu0 0.0
        %1190 = vmatpush2.msra.mxu0 0.0
        %1191 = vmatprep.mubr.f32.mxu0 0.0
        %1192 = vmatmul.mubr.f32.gmra.mxu0 %v1125
        %v1193 = vpop.f32.mrf.mxu0
        %v1194 = vadd.f32 0.0, %v1193
        %v1195 = vpop.f32.mrf.mxu0
        %1196 = vdwg.mxu0
        %v1198 = vsel %vm479, %v898, 0
        %1200 = vmatprep.subr.mxu0 0.0
        %1201 = vmatpush1.msra.mxu0 0.0
        %1202 = vmatprep.subr.mxu0 0.0
        %1203 = vmatpush1.msra.mxu0 0.0
        %1204 = vmatprep.subr.mxu0 0.0
        %1205 = vmatpush1.msra.mxu0 0.0
        %1206 = vmatprep.subr.mxu0 0.0
        %1207 = vmatpush1.msra.mxu0 0.0
        %1208 = vmatprep.subr.mxu0 0.0
        %1209 = vmatpush1.msra.mxu0 0.0
        %1210 = vmatprep.subr.mxu0 0.0
        %1211 = vmatpush1.msra.mxu0 0.0
        %1212 = vmatprep.subr.mxu0 0.0
        %1213 = vmatpush1.msra.mxu0 0.0
        %1214 = vmatprep.subr.mxu0 0.0
        %1215 = vmatpush1.msra.mxu0 0.0
        %1216 = vmatprep.subr.mxu0 0.0
        %1217 = vmatpush1.msra.mxu0 0.0
        %1218 = vmatprep.subr.mxu0 0.0
        %1219 = vmatpush1.msra.mxu0 0.0
        %1220 = vmatprep.subr.mxu0 0.0
        %1221 = vmatpush1.msra.mxu0 0.0
        %1222 = vmatprep.subr.mxu0 0.0
        %1223 = vmatpush1.msra.mxu0 0.0
        %1224 = vmatprep.subr.mxu0 0.0
        %1225 = vmatpush1.msra.mxu0 0.0
        %1226 = vmatprep.subr.mxu0 0.0
        %1227 = vmatpush1.msra.mxu0 0.0
        %1228 = vmatprep.subr.mxu0 0.0
        %1229 = vmatpush1.msra.mxu0 0.0
        %1230 = vmatprep.subr.mxu0 0.0
        %1231 = vmatpush1.msra.mxu0 %v1120
        %1232 = vmatprep.subr.mxu0 0.0
        %1233 = vmatpush2.msra.mxu0 0.0
        %1234 = vmatprep.subr.mxu0 0.0
        %1235 = vmatpush2.msra.mxu0 0.0
        %1236 = vmatprep.subr.mxu0 0.0
        %1237 = vmatpush2.msra.mxu0 0.0
        %1238 = vmatprep.subr.mxu0 0.0
        %1239 = vmatpush2.msra.mxu0 0.0
        %1240 = vmatprep.subr.mxu0 0.0
        %1241 = vmatpush2.msra.mxu0 0.0
        %1242 = vmatprep.subr.mxu0 0.0
        %1243 = vmatpush2.msra.mxu0 0.0
        %1244 = vmatprep.subr.mxu0 0.0
        %1245 = vmatpush2.msra.mxu0 0.0
        %1246 = vmatprep.subr.mxu0 0.0
        %1247 = vmatpush2.msra.mxu0 0.0
        %1248 = vmatprep.subr.mxu0 0.0
        %1249 = vmatpush2.msra.mxu0 0.0
        %1250 = vmatprep.subr.mxu0 0.0
        %1251 = vmatpush2.msra.mxu0 0.0
        %1252 = vmatprep.subr.mxu0 0.0
        %1253 = vmatpush2.msra.mxu0 0.0
        %1254 = vmatprep.subr.mxu0 0.0
        %1255 = vmatpush2.msra.mxu0 0.0
        %1256 = vmatprep.subr.mxu0 0.0
        %1257 = vmatpush2.msra.mxu0 0.0
        %1258 = vmatprep.subr.mxu0 0.0
        %1259 = vmatpush2.msra.mxu0 0.0
        %1260 = vmatprep.subr.mxu0 0.0
        %1261 = vmatpush2.msra.mxu0 0.0
        %1262 = vmatprep.subr.mxu0 0.0
        %1263 = vmatpush2.msra.mxu0 0.0
        %1264 = vmatprep.mubr.f32.mxu0 0.0
        %1265 = vmatmul.mubr.f32.gmra.mxu0 %v1198
        %v1266 = vpop.f32.mrf.mxu0
        %v1267 = vadd.f32 %v1194, %v1266
        %v1268 = vpop.f32.mrf.mxu0
        %1269 = vdwg.mxu0
        %v1271 = vsel %vm479, %v1044, 0
        %1273 = vmatprep.subr.mxu0 0.0
        %1274 = vmatpush1.msra.mxu0 0.0
        %1275 = vmatprep.subr.mxu0 0.0
        %1276 = vmatpush1.msra.mxu0 0.0
        %1277 = vmatprep.subr.mxu0 0.0
        %1278 = vmatpush1.msra.mxu0 0.0
        %1279 = vmatprep.subr.mxu0 0.0
        %1280 = vmatpush1.msra.mxu0 0.0
        %1281 = vmatprep.subr.mxu0 0.0
        %1282 = vmatpush1.msra.mxu0 0.0
        %1283 = vmatprep.subr.mxu0 0.0
        %1284 = vmatpush1.msra.mxu0 0.0
        %1285 = vmatprep.subr.mxu0 0.0
        %1286 = vmatpush1.msra.mxu0 0.0
        %1287 = vmatprep.subr.mxu0 0.0
        %1288 = vmatpush1.msra.mxu0 0.0
        %1289 = vmatprep.subr.mxu0 0.0
        %1290 = vmatpush1.msra.mxu0 0.0
        %1291 = vmatprep.subr.mxu0 0.0
        %1292 = vmatpush1.msra.mxu0 0.0
        %1293 = vmatprep.subr.mxu0 0.0
        %1294 = vmatpush1.msra.mxu0 0.0
        %1295 = vmatprep.subr.mxu0 0.0
        %1296 = vmatpush1.msra.mxu0 0.0
        %1297 = vmatprep.subr.mxu0 0.0
        %1298 = vmatpush1.msra.mxu0 0.0
        %1299 = vmatprep.subr.mxu0 0.0
        %1300 = vmatpush1.msra.mxu0 0.0
        %1301 = vmatprep.subr.mxu0 0.0
        %1302 = vmatpush1.msra.mxu0 0.0
        %1303 = vmatprep.subr.mxu0 0.0
        %1304 = vmatpush1.msra.mxu0 %v1122
        %1305 = vmatprep.subr.mxu0 0.0
        %1306 = vmatpush2.msra.mxu0 0.0
        %1307 = vmatprep.subr.mxu0 0.0
        %1308 = vmatpush2.msra.mxu0 0.0
        %1309 = vmatprep.subr.mxu0 0.0
        %1310 = vmatpush2.msra.mxu0 0.0
        %1311 = vmatprep.subr.mxu0 0.0
        %1312 = vmatpush2.msra.mxu0 0.0
        %1313 = vmatprep.subr.mxu0 0.0
        %1314 = vmatpush2.msra.mxu0 0.0
        %1315 = vmatprep.subr.mxu0 0.0
        %1316 = vmatpush2.msra.mxu0 0.0
        %1317 = vmatprep.subr.mxu0 0.0
        %1318 = vmatpush2.msra.mxu0 0.0
        %1319 = vmatprep.subr.mxu0 0.0
        %1320 = vmatpush2.msra.mxu0 0.0
        %1321 = vmatprep.subr.mxu0 0.0
        %1322 = vmatpush2.msra.mxu0 0.0
        %1323 = vmatprep.subr.mxu0 0.0
        %1324 = vmatpush2.msra.mxu0 0.0
        %1325 = vmatprep.subr.mxu0 0.0
        %1326 = vmatpush2.msra.mxu0 0.0
        %1327 = vmatprep.subr.mxu0 0.0
        %1328 = vmatpush2.msra.mxu0 0.0
        %1329 = vmatprep.subr.mxu0 0.0
        %1330 = vmatpush2.msra.mxu0 0.0
        %1331 = vmatprep.subr.mxu0 0.0
        %1332 = vmatpush2.msra.mxu0 0.0
        %1333 = vmatprep.subr.mxu0 0.0
        %1334 = vmatpush2.msra.mxu0 0.0
        %1335 = vmatprep.subr.mxu0 0.0
        %1336 = vmatpush2.msra.mxu0 0.0
        %1337 = vmatprep.mubr.f32.mxu0 0.0
        %1338 = vmatmul.mubr.f32.gmra.mxu0 %v1271
        %v1339 = vpop.f32.mrf.mxu0
        %v1340 = vadd.f32 0.0, %v1339
        %v1341 = vpop.f32.mrf.mxu0
        %1342 = vdwg.mxu0
        %v1343 = vadd.f32 %v1267, %v1340
        %v1345 = vsel %vm479, %v1117, 0
        %1347 = vmatprep.subr.mxu0 0.0
        %1348 = vmatpush1.msra.mxu0 0.0
        %1349 = vmatprep.subr.mxu0 0.0
        %1350 = vmatpush1.msra.mxu0 0.0
        %1351 = vmatprep.subr.mxu0 0.0
        %1352 = vmatpush1.msra.mxu0 0.0
        %1353 = vmatprep.subr.mxu0 0.0
        %1354 = vmatpush1.msra.mxu0 0.0
        %1355 = vmatprep.subr.mxu0 0.0
        %1356 = vmatpush1.msra.mxu0 0.0
        %1357 = vmatprep.subr.mxu0 0.0
        %1358 = vmatpush1.msra.mxu0 0.0
        %1359 = vmatprep.subr.mxu0 0.0
        %1360 = vmatpush1.msra.mxu0 0.0
        %1361 = vmatprep.subr.mxu0 0.0
        %1362 = vmatpush1.msra.mxu0 0.0
        %1363 = vmatprep.subr.mxu0 0.0
        %1364 = vmatpush1.msra.mxu0 0.0
        %1365 = vmatprep.subr.mxu0 0.0
        %1366 = vmatpush1.msra.mxu0 0.0
        %1367 = vmatprep.subr.mxu0 0.0
        %1368 = vmatpush1.msra.mxu0 0.0
        %1369 = vmatprep.subr.mxu0 0.0
        %1370 = vmatpush1.msra.mxu0 0.0
        %1371 = vmatprep.subr.mxu0 0.0
        %1372 = vmatpush1.msra.mxu0 0.0
        %1373 = vmatprep.subr.mxu0 0.0
        %1374 = vmatpush1.msra.mxu0 0.0
        %1375 = vmatprep.subr.mxu0 0.0
        %1376 = vmatpush1.msra.mxu0 0.0
        %1377 = vmatprep.subr.mxu0 0.0
        %1378 = vmatpush1.msra.mxu0 %v1123
        %1379 = vmatprep.subr.mxu0 0.0
        %1380 = vmatpush2.msra.mxu0 0.0
        %1381 = vmatprep.subr.mxu0 0.0
        %1382 = vmatpush2.msra.mxu0 0.0
        %1383 = vmatprep.subr.mxu0 0.0
        %1384 = vmatpush2.msra.mxu0 0.0
        %1385 = vmatprep.subr.mxu0 0.0
        %1386 = vmatpush2.msra.mxu0 0.0
        %1387 = vmatprep.subr.mxu0 0.0
        %1388 = vmatpush2.msra.mxu0 0.0
        %1389 = vmatprep.subr.mxu0 0.0
        %1390 = vmatpush2.msra.mxu0 0.0
        %1391 = vmatprep.subr.mxu0 0.0
        %1392 = vmatpush2.msra.mxu0 0.0
        %1393 = vmatprep.subr.mxu0 0.0
        %1394 = vmatpush2.msra.mxu0 0.0
        %1395 = vmatprep.subr.mxu0 0.0
        %1396 = vmatpush2.msra.mxu0 0.0
        %1397 = vmatprep.subr.mxu0 0.0
        %1398 = vmatpush2.msra.mxu0 0.0
        %1399 = vmatprep.subr.mxu0 0.0
        %1400 = vmatpush2.msra.mxu0 0.0
        %1401 = vmatprep.subr.mxu0 0.0
        %1402 = vmatpush2.msra.mxu0 0.0
        %1403 = vmatprep.subr.mxu0 0.0
        %1404 = vmatpush2.msra.mxu0 0.0
        %1405 = vmatprep.subr.mxu0 0.0
        %1406 = vmatpush2.msra.mxu0 0.0
        %1407 = vmatprep.subr.mxu0 0.0
        %1408 = vmatpush2.msra.mxu0 0.0
        %1409 = vmatprep.subr.mxu0 0.0
        %1410 = vmatpush2.msra.mxu0 0.0
        %1411 = vmatprep.mubr.f32.mxu0 0.0
        %1412 = vmatmul.mubr.f32.gmra.mxu0 %v1345
        %v1413 = vpop.f32.mrf.mxu0
        %v1414 = vadd.f32 0.0, %v1413
        %v1415 = vpop.f32.mrf.mxu0
        %1416 = vdwg.mxu0
        %v1417 = vadd.f32 %v1343, %v1414
        %v1418 = vld [vmem:[#allocation2] sm:$0xff]
        %v1419 = vadd.f32 %v1418, %v1417
        %vm1420 = vcmask 261120
        %1421 = vst.msk [vmem:[#allocation2] sm:$0xff] %vm1420, %v1419
        // Predicated region
        $region69: #{tpu_custom_call.1} parent=43 // pred_check
          %p1422 = pneg %p457
        $region70: #{tpu_custom_call.1} parent=43 // pred_check_branch
          %1424 = sbr.rel (%p1422) target = $region72
        $region71: #{tpu_custom_call.1} parent=43 // pred_region
          %v1425 = vld [vmem:[#allocation2] sm:$0xff]
          %v1426 = vld [vmem:[%s5] sm:$0x1]
          %v1428 = vlaneseq
          %v1429 = vshrl.u32 %v1428, 7
          %v1430 = vsub.s32 0, %v1429
          %v1431 = vrot.slane %v1426, %v1430
          %v1433 = vadd.f32 %v1425, %v1431
          %1434 = vst.msk [vmem:[%s451] sm:$0xff] %vm1420, %v1433
        $region72: #{tpu_custom_call.1} parent=43 // pred_fallthru
          _
        %s1435 = sand.u32 %s221, 1
        %s1436 = scalar_lea.sflag [#allocation5], %s1435
        %s1437 = sand.u32 %s221, 1
        %s1438 = smul.addr %s1437, 8
        %s1439 = scalar_lea.vmem [#allocation12], %s1438
        // Predicated region
        $region73: #{tpu_custom_call.1} parent=43 // pred_check
          %p1440 = pneg %p231
        $region74: #{tpu_custom_call.1} parent=43 // pred_check_branch
          %1442 = sbr.rel (%p1440) target = $region76
        $region75: #{tpu_custom_call.1} parent=43 // pred_region
          %s1444 = ssub.s32 128, 128
          %1445 = vsyncadd %s1436, %s1444
          %s1446 = sadd.s32 %s35, %s34
          %s1447 = smul.addr %s1446, 128
          %s1448 = scalar_lea.hbm %s6, %s1447
          %s1450 = sshll.u32 %s1439, 4
          %s1451 = int_to_ptr.vmem [resolvable:$true] %s1450
          %1453 = dma.vmem_to_hbm [thread:$0]  %s1451, 128, %s1448, %s1436
        $region76: #{tpu_custom_call.1} parent=43 // pred_fallthru
          _
      $region44: #{tpu_custom_call.1} parent=5 // pred_fallthru
        _
      %p1454 = scmp.le.s32.totalorder 2, %s24
      // Predicated region
      $region77: #{tpu_custom_call.1} parent=5 // pred_check
        %p1455 = pneg %p1454
      $region78: #{tpu_custom_call.1} parent=5 // pred_check_branch
        %1457 = sbr.rel (%p1455) target = $region80
      $region79: #{tpu_custom_call.1} parent=5 // pred_region
        %s1458 = ssub.s32 %s24, 2
        // Predicated region
        $region81: #{tpu_custom_call.1} parent=79 // pred_check
          %p1459 = pneg %p237
        $region82: #{tpu_custom_call.1} parent=79 // pred_check_branch
          %1461 = sbr.rel (%p1459) target = $region84
        $region83: #{tpu_custom_call.1} parent=79 // pred_region
          %s1462 = sand.u32 %s222, 1
          %s1463 = scalar_lea.sflag [#allocation5], %s1462
          %s1464 = sand.u32 %s222, 1
          %s1465 = smul.addr %s1464, 8
          %s1466 = scalar_lea.vmem [#allocation12], %s1465
          %1467 = dma.done %s1463, 128
        $region84: #{tpu_custom_call.1} parent=79 // pred_fallthru
          _
      $region80: #{tpu_custom_call.1} parent=5 // pred_fallthru
        _
    $region6: #{tpu_custom_call.1} parent=1 // loop_footer
      %s28 = sadd.s32 1, %s24
    $region7: #{tpu_custom_call.1} parent=1 // loop_footer_branch
      %23 = sbr.rel target = $region3
    $region8: #{tpu_custom_call.1} parent=1 // loop_exit
      _
    %1468 = vsyncpa [#allocation4], 1
    %s1469 = scalar_lea.sflag [#allocation4], 1
    %1470 = vsyncpa %s1469, 1
    %1471 = vsyncpa [#allocation7], 1
    %s1472 = scalar_lea.sflag [#allocation7], 1
    %1473 = vsyncpa %s1472, 1
    %1474 = vsyncpa [#allocation10], 1
    %s1475 = scalar_lea.sflag [#allocation10], 1
    %1476 = vsyncpa %s1475, 1
    %1477 = vsyncpa [#allocation5], 1
    %s1478 = scalar_lea.sflag [#allocation5], 1
    %1479 = vsyncpa %s1478, 1

</llo_original>
